<compile_context>
chip_gen: v5e
topology: v5e:2x2
jax: 0.10.0
libtpu: 0.0.40
codegen_flags: <defaults>
</compile_context>

<pallas_src>
import functools

import jax
import jax.numpy as jnp
from jax.experimental import pallas as pl
from jax.experimental.pallas import tpu as pltpu


def _round_up(x, m):
    return (x + m - 1) // m * m


def _pick_batch_block(n):
    # Prefer >=2 parallel grid steps (keeps both v7x TensorCores busy); within
    # that, pack as many samples per step as possible to amortize the
    # ~0.35us per-grid-step overhead.
    for nb in (8, 4, 2):
        if n % nb == 0 and n // nb >= 2:
            return nb
    return 1


def _dkg_kernel(x1_ref, x2_ref, wkern_ref, bkern_ref, wk_ref, bk_ref,
                wstat_ref, wfr_ref, wfs_ref, bfuse_ref, out_ref,
                *, d, h, w, nb, x1_starts, x2_starts, mxu_dtype):
    """One grid step = `nb` samples, spatial dims flattened onto lanes.

    x1_ref/x2_ref : (nb, cg, FLAT) zero-padded strided-flat inputs
    out_ref       : (nb, planes, D) strided-flat outputs (junk columns are
                    sliced off by the wrapper)
    """
    f32 = jnp.float32
    if mxu_dtype is None:
        cast = lambda a: a
    else:
        cast = lambda a: a.astype(mxu_dtype)

    cg = x1_ref.shape[1]

    # Tiny weights: constant index_maps => fetched once, kept in vregs.
    wkern = wkern_ref[...]                       # (1, k*k)
    bkern = bkern_ref[...]                       # (1, k*k)
    wk = wk_ref[...]                             # (1, 1)
    bk = bk_ref[...]                             # (1, 1)
    wstat = cast(wstat_ref[...])                 # (9, cg, cg) per-tap (oc, ic)
    wfr = cast(wfr_ref[...])                     # (planes, cg)   fuse | y_res
    wfs = cast(wfs_ref[...])                     # (planes, cg)   fuse | y_stat
    bfuse = bfuse_ref[...]                       # (planes, 1)  (bstat folded)

    inv_hw = 1.0 / float(h * w)

    for b in range(nb):                          # static, small (<= 8)
        # ---- AdaptiveAvgPool2d(1): padding / tail are zeros, so a full
        #      lane reduction divided by H*W is exact. ----
        g = jnp.sum(x1_ref[b], axis=-1, keepdims=True) * inv_hw       # (cg, 1)

        # ---- conv_kernel (1x1, 1->k*k) then conv_k (1x1, 1->1):
        #      gk[c, o] = wk * (wkern[o] * g[c] + bkern[o]) + bk  ----
        gk = wk * (g * wkern + bkern) + bk                            # (cg, kk)

        # ---- dynamic depthwise k x k conv: per-channel scalar taps (VPU),
        #      each tap is a contiguous lane slice of the padded-flat slab --
        acc_res = jnp.zeros((cg, d), f32)
        for o, s in enumerate(x1_starts):
            tap = x1_ref[b, :, pl.ds(s, d)]                           # (cg, d)
            acc_res = acc_res + gk[:, o:o + 1] * tap

        # ---- static 3x3 conv: 9 MXU matmuls (cg,cg)@(cg,D), f32 accumulate -
        acc_stat = jnp.zeros((cg, d), f32)
        for t, s in enumerate(x2_starts):
            tap = cast(x2_ref[b, :, pl.ds(s, d)])                     # (cg, d)
            acc_stat = acc_stat + jnp.dot(wstat[t], tap,
                                          preferred_element_type=f32)

        # ---- fuse: 1x1 conv over concat([y_res, y_stat]) as two MXU matmuls
        #      (bias already contains wfs @ bstat from the wrapper) ----
        y = (jnp.dot(wfr, cast(acc_res), preferred_element_type=f32)
             + jnp.dot(wfs, cast(acc_stat), preferred_element_type=f32)
             + bfuse)
        out_ref[b] = y.astype(out_ref.dtype)                          # dense vst


def _const_spec(shape):
    zeros = (0,) * len(shape)
    return pl.BlockSpec(shape, lambda *_: zeros)


def dkg_forward(x, params, *, k, planes, padding=None, stride=1,
                nb=None, mxu_dtype=None, vmem_limit_bytes=None):
    """x: (N, C, H, W) float32. Returns (N, planes, H, W)."""
    assert stride == 1, "channel-cat in DKG only shape-checks for stride=1"
    n, c, h, w = x.shape
    cg = c // 2
    p = (k - 1) // 2 if padding is None else padding
    assert h + 2 * p - k + 1 == h and w + 2 * p - k + 1 == w

    # Common spatial zero-padding P for both halves so the strided-flat
    # domains of the dynamic (k x k, pad p) and static (3x3, pad 1) convs
    # share the same row stride Wp.
    P = max(p, 1)
    wpp = w + 2 * P
    hpp = h + 2 * P
    d = _round_up(h * wpp, 128)                  # lane-dense accumulation dom.

    # Tap start offsets in the padded-flat layout (static Python ints).
    x1_starts = tuple((dy - p + P) * wpp + (dx - p + P)
                      for dy in range(k) for dx in range(k))
    x2_starts = tuple((dy - 1 + P) * wpp + (dx - 1 + P)
                      for dy in range(3) for dx in range(3))
    max_start = max(max(x1_starts), max(x2_starts))
    flat = _round_up(max(hpp * wpp, max_start + d), 128)

    # ---- layout glue (XLA): split channels, zero-pad, flatten spatial ----
    # TODO(synk): replace with an in-kernel zero-init scratch + strided DMA to
    #             avoid the extra HBM copy of x.
    def prep(xh):
        xp = jnp.pad(xh, ((0, 0), (0, 0), (P, P), (P, P)))
        xp = xp.reshape(n, cg, hpp * wpp)
        return jnp.pad(xp, ((0, 0), (0, 0), (0, flat - hpp * wpp)))

    x1f = prep(x[:, :cg])
    x2f = prep(x[:, cg:])

    # ---- reshape the tiny weights into kernel-friendly VMEM operands ----
    wkern = params["wkern"].reshape(1, k * k)
    bkern = params["bkern"].reshape(1, k * k)
    wk = params["wk"].reshape(1, 1)
    bk = params["bk"].reshape(1, 1)
    wstat = params["wstat"].reshape(cg, cg, 3, 3)
    wstat_t = jnp.transpose(wstat, (2, 3, 0, 1)).reshape(9, cg, cg)
    bstat = params["bstat"].reshape(cg, 1)
    wfuse = params["wfuse"].reshape(planes, c)
    wf_res = wfuse[:, :cg]
    wf_stat = wfuse[:, cg:]
    # Fold conv_static's bias through the fuse 1x1 conv (wrapper-side, once).
    bfuse_eff = params["bfuse"].reshape(planes, 1) + wf_stat @ bstat

    if nb is None:
        nb = _pick_batch_block(n)
    assert n % nb == 0
    grid = (n // nb,)

    kernel = functools.partial(
        _dkg_kernel, d=d, h=h, w=w, nb=nb,
        x1_starts=x1_starts, x2_starts=x2_starts, mxu_dtype=mxu_dtype)

    compiler_params = pltpu.CompilerParams(
        dimension_semantics=("parallel",),
        vmem_limit_bytes=vmem_limit_bytes)

    out_flat = pl.pallas_call(
        kernel,
        out_shape=jax.ShapeDtypeStruct((n, planes, d), x.dtype),
        grid=grid,
        in_specs=[
            pl.BlockSpec((nb, cg, flat), lambda i: (i, 0, 0)),
            pl.BlockSpec((nb, cg, flat), lambda i: (i, 0, 0)),
            _const_spec((1, k * k)),        # wkern
            _const_spec((1, k * k)),        # bkern
            _const_spec((1, 1)),            # wk
            _const_spec((1, 1)),            # bk
            _const_spec((9, cg, cg)),       # wstat (per-tap (oc, ic))
            _const_spec((planes, cg)),      # fuse weight for y_res
            _const_spec((planes, cg)),      # fuse weight for y_stat
            _const_spec((planes, 1)),       # bfuse (+ folded bstat)
        ],
        out_specs=pl.BlockSpec((nb, planes, d), lambda i: (i, 0, 0)),
        compiler_params=compiler_params,
    )(x1f, x2f, wkern, bkern, wk, bk, wstat_t, wf_res, wf_stat, bfuse_eff)

    # De-stride: valid pixel (h, w) lives at flat position h*Wp + w.
    out = out_flat[:, :, :h * wpp].reshape(n, planes, h, wpp)[:, :, :, :w]
    return out


def dkg_reference(x, params, *, k, planes):
    """Pure-JAX reference for numerical validation."""
    n, c, h, w = x.shape
    cg = c // 2
    p = (k - 1) // 2
    x1, x2 = x[:, :cg], x[:, cg:]
    g = jnp.mean(x1, axis=(2, 3))                                    # (N, cg)
    ker = g[:, :, None] * params["wkern"][None, None, :] + params["bkern"]
    gk = params["wk"][0] * ker + params["bk"][0]                     # (N,cg,k*k)
    x1p = jnp.pad(x1, ((0, 0), (0, 0), (p, p), (p, p)))
    y_res = jnp.zeros((n, cg, h, w), jnp.float32)
    for dy in range(k):
        for dx in range(k):
            o = dy * k + dx
            y_res = y_res + gk[:, :, o][:, :, None, None] * \
                x1p[:, :, dy:dy + h, dx:dx + w]
    wstat = params["wstat"].reshape(cg, cg, 3, 3)
    y_stat = jax.lax.conv_general_dilated(
        x2, wstat, (1, 1), ((1, 1), (1, 1)),
        dimension_numbers=("NCHW", "OIHW", "NCHW"))
    y_stat = y_stat + params["bstat"][None, :, None, None]
    ycat = jnp.concatenate([y_res, y_stat], axis=1)
    wfuse = params["wfuse"].reshape(planes, c)
    y = jnp.einsum("oc,nchw->nohw", wfuse, ycat)
    return y + params["bfuse"][None, :, None, None]


if __name__ == "__main__":
    k_ = 3
    inplanes, planes = 4, 4
    n, h, w = 2, 16, 16
    cg = inplanes // 2

    keys = jax.random.split(jax.random.PRNGKey(0), 9)
    params = {
        "wkern": 0.2 * jax.random.normal(keys[0], (k_ * k_,), jnp.float32),
        "bkern": 0.2 * jax.random.normal(keys[1], (k_ * k_,), jnp.float32),
        "wk":    0.5 * jax.random.normal(keys[2], (1,), jnp.float32),
        "bk":    0.5 * jax.random.normal(keys[3], (1,), jnp.float32),
        "wstat": 0.2 * jax.random.normal(keys[4], (cg * cg * 9,), jnp.float32),
        "bstat": 0.2 * jax.random.normal(keys[5], (cg,), jnp.float32),
        "wfuse": 0.2 * jax.random.normal(keys[6], (planes * inplanes,),
                                         jnp.float32),
        "bfuse": 0.2 * jax.random.normal(keys[7], (planes,), jnp.float32),
    }
    x = jax.random.normal(keys[8], (n, inplanes, h, w), jnp.float32)

    y = dkg_forward(x, params, k=k_, planes=planes)
    y = jax.block_until_ready(y)

    y_ref = dkg_reference(x, params, k=k_, planes=planes)
    assert y.shape == (n, planes, h, w)
    err = float(jnp.max(jnp.abs(y - y_ref)))
    assert jnp.allclose(y, y_ref, atol=1e-4, rtol=1e-4), err
    print("KERNEL_OK")
</pallas_src>

<mosaic_0001>
module attributes {stable_mosaic.version = 11 : i64} {
  func.func @_dkg_kernel(%arg0: i32, %arg1: memref<1x2x512xf32, #tpu.memory_space<vmem>>, %arg2: memref<1x2x512xf32, #tpu.memory_space<vmem>>, %arg3: memref<1x9xf32, #tpu.memory_space<vmem>>, %arg4: memref<1x9xf32, #tpu.memory_space<vmem>>, %arg5: memref<1x1xf32, #tpu.memory_space<vmem>>, %arg6: memref<1x1xf32, #tpu.memory_space<vmem>>, %arg7: memref<9x2x2xf32, #tpu.memory_space<vmem>>, %arg8: memref<4x2xf32, #tpu.memory_space<vmem>>, %arg9: memref<4x2xf32, #tpu.memory_space<vmem>>, %arg10: memref<4x1xf32, #tpu.memory_space<vmem>>, %arg11: memref<1x4x384xf32, #tpu.memory_space<vmem>>) attributes {dimension_semantics = [#tpu.dimension_semantics<parallel>], iteration_bounds = array<i64: 2>, scalar_prefetch = 0 : i64, scratch_operands = 0 : i64, tpu.core_type = #tpu.core_type<tc>, window_params = [{transform_indices = @transform_0, window_bounds = array<i64: 1, 2, 512>}, {transform_indices = @transform_1, window_bounds = array<i64: 1, 2, 512>}, {pipeline_mode = #tpu.pipeline_mode<synchronous>, transform_indices = @transform_2, window_bounds = array<i64: 1, 9>}, {pipeline_mode = #tpu.pipeline_mode<synchronous>, transform_indices = @transform_3, window_bounds = array<i64: 1, 9>}, {pipeline_mode = #tpu.pipeline_mode<synchronous>, transform_indices = @transform_4, window_bounds = array<i64: 1, 1>}, {pipeline_mode = #tpu.pipeline_mode<synchronous>, transform_indices = @transform_5, window_bounds = array<i64: 1, 1>}, {pipeline_mode = #tpu.pipeline_mode<synchronous>, transform_indices = @transform_6, window_bounds = array<i64: 9, 2, 2>}, {pipeline_mode = #tpu.pipeline_mode<synchronous>, transform_indices = @transform_7, window_bounds = array<i64: 4, 2>}, {pipeline_mode = #tpu.pipeline_mode<synchronous>, transform_indices = @transform_8, window_bounds = array<i64: 4, 2>}, {pipeline_mode = #tpu.pipeline_mode<synchronous>, transform_indices = @transform_9, window_bounds = array<i64: 4, 1>}, {transform_indices = @transform_10, window_bounds = array<i64: 1, 4, 384>}]} {
    %c0 = arith.constant 0 : index
    %c0_0 = arith.constant 0 : index
    %0 = vector.load %arg3[%c0, %c0_0] : memref<1x9xf32, #tpu.memory_space<vmem>>, vector<1x9xf32>
    %c0_1 = arith.constant 0 : index
    %c0_2 = arith.constant 0 : index
    %1 = vector.load %arg4[%c0_1, %c0_2] : memref<1x9xf32, #tpu.memory_space<vmem>>, vector<1x9xf32>
    %c0_3 = arith.constant 0 : index
    %c0_4 = arith.constant 0 : index
    %2 = vector.load %arg5[%c0_3, %c0_4] : memref<1x1xf32, #tpu.memory_space<vmem>>, vector<1x1xf32>
    %c0_5 = arith.constant 0 : index
    %c0_6 = arith.constant 0 : index
    %3 = vector.load %arg6[%c0_5, %c0_6] : memref<1x1xf32, #tpu.memory_space<vmem>>, vector<1x1xf32>
    %c0_7 = arith.constant 0 : index
    %c0_8 = arith.constant 0 : index
    %c0_9 = arith.constant 0 : index
    %4 = vector.load %arg7[%c0_7, %c0_8, %c0_9] : memref<9x2x2xf32, #tpu.memory_space<vmem>>, vector<9x2x2xf32>
    %c0_10 = arith.constant 0 : index
    %c0_11 = arith.constant 0 : index
    %5 = vector.load %arg8[%c0_10, %c0_11] : memref<4x2xf32, #tpu.memory_space<vmem>>, vector<4x2xf32>
    %c0_12 = arith.constant 0 : index
    %c0_13 = arith.constant 0 : index
    %6 = vector.load %arg9[%c0_12, %c0_13] : memref<4x2xf32, #tpu.memory_space<vmem>>, vector<4x2xf32>
    %c0_14 = arith.constant 0 : index
    %c0_15 = arith.constant 0 : index
    %7 = vector.load %arg10[%c0_14, %c0_15] : memref<4x1xf32, #tpu.memory_space<vmem>>, vector<4x1xf32>
    %c0_16 = arith.constant 0 : index
    %c0_17 = arith.constant 0 : index
    %c0_18 = arith.constant 0 : index
    %8 = vector.load %arg1[%c0_16, %c0_17, %c0_18] : memref<1x2x512xf32, #tpu.memory_space<vmem>>, vector<1x2x512xf32>
    %9 = vector.shape_cast %8 : vector<1x2x512xf32> to vector<2x512xf32>
    %cst = arith.constant dense<0.000000e+00> : vector<2xf32>
    %10 = vector.multi_reduction <add>, %9, %cst [1] : vector<2x512xf32> to vector<2xf32>
    %11 = vector.shape_cast %10 : vector<2xf32> to vector<2x1xf32>
    %cst_19 = arith.constant 3.906250e-03 : f32
    %12 = vector.broadcast %cst_19 : f32 to vector<2x1xf32>
    %13 = arith.mulf %11, %12 : vector<2x1xf32>
    %14 = vector.broadcast %13 : vector<2x1xf32> to vector<2x9xf32>
    %15 = vector.broadcast %0 : vector<1x9xf32> to vector<2x9xf32>
    %16 = arith.mulf %14, %15 : vector<2x9xf32>
    %17 = vector.broadcast %1 : vector<1x9xf32> to vector<2x9xf32>
    %18 = arith.addf %16, %17 : vector<2x9xf32>
    %19 = vector.broadcast %2 : vector<1x1xf32> to vector<2x9xf32>
    %20 = arith.mulf %19, %18 : vector<2x9xf32>
    %21 = vector.broadcast %3 : vector<1x1xf32> to vector<2x9xf32>
    %22 = arith.addf %20, %21 : vector<2x9xf32>
    %cst_20 = arith.constant 0.000000e+00 : f32
    %23 = vector.broadcast %cst_20 : f32 to vector<2x384xf32>
    %c0_21 = arith.constant 0 : index
    %c0_22 = arith.constant 0 : index
    %c0_23 = arith.constant 0 : index
    %24 = vector.load %arg1[%c0_21, %c0_22, %c0_23] : memref<1x2x512xf32, #tpu.memory_space<vmem>>, vector<1x2x384xf32>
    %25 = vector.shape_cast %24 : vector<1x2x384xf32> to vector<2x384xf32>
    %26 = vector.extract_strided_slice %22 {offsets = [0, 0], sizes = [2, 1], strides = [1, 1]} : vector<2x9xf32> to vector<2x1xf32>
    %27 = vector.broadcast %26 : vector<2x1xf32> to vector<2x384xf32>
    %28 = arith.mulf %27, %25 : vector<2x384xf32>
    %29 = arith.addf %23, %28 : vector<2x384xf32>
    %c0_24 = arith.constant 0 : index
    %c0_25 = arith.constant 0 : index
    %c1 = arith.constant 1 : index
    %30 = vector.load %arg1[%c0_24, %c0_25, %c1] : memref<1x2x512xf32, #tpu.memory_space<vmem>>, vector<1x2x384xf32>
    %31 = vector.shape_cast %30 : vector<1x2x384xf32> to vector<2x384xf32>
    %32 = vector.extract_strided_slice %22 {offsets = [0, 1], sizes = [2, 1], strides = [1, 1]} : vector<2x9xf32> to vector<2x1xf32>
    %33 = vector.broadcast %32 : vector<2x1xf32> to vector<2x384xf32>
    %34 = arith.mulf %33, %31 : vector<2x384xf32>
    %35 = arith.addf %29, %34 : vector<2x384xf32>
    %c0_26 = arith.constant 0 : index
    %c0_27 = arith.constant 0 : index
    %c2 = arith.constant 2 : index
    %36 = vector.load %arg1[%c0_26, %c0_27, %c2] : memref<1x2x512xf32, #tpu.memory_space<vmem>>, vector<1x2x384xf32>
    %37 = vector.shape_cast %36 : vector<1x2x384xf32> to vector<2x384xf32>
    %38 = vector.extract_strided_slice %22 {offsets = [0, 2], sizes = [2, 1], strides = [1, 1]} : vector<2x9xf32> to vector<2x1xf32>
    %39 = vector.broadcast %38 : vector<2x1xf32> to vector<2x384xf32>
    %40 = arith.mulf %39, %37 : vector<2x384xf32>
    %41 = arith.addf %35, %40 : vector<2x384xf32>
    %c0_28 = arith.constant 0 : index
    %c0_29 = arith.constant 0 : index
    %c18 = arith.constant 18 : index
    %42 = vector.load %arg1[%c0_28, %c0_29, %c18] : memref<1x2x512xf32, #tpu.memory_space<vmem>>, vector<1x2x384xf32>
    %43 = vector.shape_cast %42 : vector<1x2x384xf32> to vector<2x384xf32>
    %44 = vector.extract_strided_slice %22 {offsets = [0, 3], sizes = [2, 1], strides = [1, 1]} : vector<2x9xf32> to vector<2x1xf32>
    %45 = vector.broadcast %44 : vector<2x1xf32> to vector<2x384xf32>
    %46 = arith.mulf %45, %43 : vector<2x384xf32>
    %47 = arith.addf %41, %46 : vector<2x384xf32>
    %c0_30 = arith.constant 0 : index
    %c0_31 = arith.constant 0 : index
    %c19 = arith.constant 19 : index
    %48 = vector.load %arg1[%c0_30, %c0_31, %c19] : memref<1x2x512xf32, #tpu.memory_space<vmem>>, vector<1x2x384xf32>
    %49 = vector.shape_cast %48 : vector<1x2x384xf32> to vector<2x384xf32>
    %50 = vector.extract_strided_slice %22 {offsets = [0, 4], sizes = [2, 1], strides = [1, 1]} : vector<2x9xf32> to vector<2x1xf32>
    %51 = vector.broadcast %50 : vector<2x1xf32> to vector<2x384xf32>
    %52 = arith.mulf %51, %49 : vector<2x384xf32>
    %53 = arith.addf %47, %52 : vector<2x384xf32>
    %c0_32 = arith.constant 0 : index
    %c0_33 = arith.constant 0 : index
    %c20 = arith.constant 20 : index
    %54 = vector.load %arg1[%c0_32, %c0_33, %c20] : memref<1x2x512xf32, #tpu.memory_space<vmem>>, vector<1x2x384xf32>
    %55 = vector.shape_cast %54 : vector<1x2x384xf32> to vector<2x384xf32>
    %56 = vector.extract_strided_slice %22 {offsets = [0, 5], sizes = [2, 1], strides = [1, 1]} : vector<2x9xf32> to vector<2x1xf32>
    %57 = vector.broadcast %56 : vector<2x1xf32> to vector<2x384xf32>
    %58 = arith.mulf %57, %55 : vector<2x384xf32>
    %59 = arith.addf %53, %58 : vector<2x384xf32>
    %c0_34 = arith.constant 0 : index
    %c0_35 = arith.constant 0 : index
    %c36 = arith.constant 36 : index
    %60 = vector.load %arg1[%c0_34, %c0_35, %c36] : memref<1x2x512xf32, #tpu.memory_space<vmem>>, vector<1x2x384xf32>
    %61 = vector.shape_cast %60 : vector<1x2x384xf32> to vector<2x384xf32>
    %62 = vector.extract_strided_slice %22 {offsets = [0, 6], sizes = [2, 1], strides = [1, 1]} : vector<2x9xf32> to vector<2x1xf32>
    %63 = vector.broadcast %62 : vector<2x1xf32> to vector<2x384xf32>
    %64 = arith.mulf %63, %61 : vector<2x384xf32>
    %65 = arith.addf %59, %64 : vector<2x384xf32>
    %c0_36 = arith.constant 0 : index
    %c0_37 = arith.constant 0 : index
    %c37 = arith.constant 37 : index
    %66 = vector.load %arg1[%c0_36, %c0_37, %c37] : memref<1x2x512xf32, #tpu.memory_space<vmem>>, vector<1x2x384xf32>
    %67 = vector.shape_cast %66 : vector<1x2x384xf32> to vector<2x384xf32>
    %68 = vector.extract_strided_slice %22 {offsets = [0, 7], sizes = [2, 1], strides = [1, 1]} : vector<2x9xf32> to vector<2x1xf32>
    %69 = vector.broadcast %68 : vector<2x1xf32> to vector<2x384xf32>
    %70 = arith.mulf %69, %67 : vector<2x384xf32>
    %71 = arith.addf %65, %70 : vector<2x384xf32>
    %c0_38 = arith.constant 0 : index
    %c0_39 = arith.constant 0 : index
    %c38 = arith.constant 38 : index
    %72 = vector.load %arg1[%c0_38, %c0_39, %c38] : memref<1x2x512xf32, #tpu.memory_space<vmem>>, vector<1x2x384xf32>
    %73 = vector.shape_cast %72 : vector<1x2x384xf32> to vector<2x384xf32>
    %74 = vector.extract_strided_slice %22 {offsets = [0, 8], sizes = [2, 1], strides = [1, 1]} : vector<2x9xf32> to vector<2x1xf32>
    %75 = vector.broadcast %74 : vector<2x1xf32> to vector<2x384xf32>
    %76 = arith.mulf %75, %73 : vector<2x384xf32>
    %77 = arith.addf %71, %76 : vector<2x384xf32>
    %cst_40 = arith.constant 0.000000e+00 : f32
    %78 = vector.broadcast %cst_40 : f32 to vector<2x384xf32>
    %c0_41 = arith.constant 0 : index
    %c0_42 = arith.constant 0 : index
    %c0_43 = arith.constant 0 : index
    %79 = vector.load %arg2[%c0_41, %c0_42, %c0_43] : memref<1x2x512xf32, #tpu.memory_space<vmem>>, vector<1x2x384xf32>
    %80 = vector.shape_cast %79 : vector<1x2x384xf32> to vector<2x384xf32>
    %81 = vector.extract_strided_slice %4 {offsets = [0, 0, 0], sizes = [1, 2, 2], strides = [1, 1, 1]} : vector<9x2x2xf32> to vector<1x2x2xf32>
    %82 = vector.shape_cast %81 : vector<1x2x2xf32> to vector<2x2xf32>
    %cst_44 = arith.constant dense<0.000000e+00> : vector<2x384xf32>
    %83 = tpu.matmul %82, %80, %cst_44 {dimension_numbers = #tpu.dot_dimension_numbers<[1], [0], [0], [1], [0, 0, 1, 1], [], []>} : vector<2x2xf32>, vector<2x384xf32>, vector<2x384xf32> -> vector<2x384xf32>
    %84 = arith.addf %78, %83 : vector<2x384xf32>
    %c0_45 = arith.constant 0 : index
    %c0_46 = arith.constant 0 : index
    %c1_47 = arith.constant 1 : index
    %85 = vector.load %arg2[%c0_45, %c0_46, %c1_47] : memref<1x2x512xf32, #tpu.memory_space<vmem>>, vector<1x2x384xf32>
    %86 = vector.shape_cast %85 : vector<1x2x384xf32> to vector<2x384xf32>
    %87 = vector.extract_strided_slice %4 {offsets = [1, 0, 0], sizes = [1, 2, 2], strides = [1, 1, 1]} : vector<9x2x2xf32> to vector<1x2x2xf32>
    %88 = vector.shape_cast %87 : vector<1x2x2xf32> to vector<2x2xf32>
    %cst_48 = arith.constant dense<0.000000e+00> : vector<2x384xf32>
    %89 = tpu.matmul %88, %86, %cst_48 {dimension_numbers = #tpu.dot_dimension_numbers<[1], [0], [0], [1], [0, 0, 1, 1], [], []>} : vector<2x2xf32>, vector<2x384xf32>, vector<2x384xf32> -> vector<2x384xf32>
    %90 = arith.addf %84, %89 : vector<2x384xf32>
    %c0_49 = arith.constant 0 : index
    %c0_50 = arith.constant 0 : index
    %c2_51 = arith.constant 2 : index
    %91 = vector.load %arg2[%c0_49, %c0_50, %c2_51] : memref<1x2x512xf32, #tpu.memory_space<vmem>>, vector<1x2x384xf32>
    %92 = vector.shape_cast %91 : vector<1x2x384xf32> to vector<2x384xf32>
    %93 = vector.extract_strided_slice %4 {offsets = [2, 0, 0], sizes = [1, 2, 2], strides = [1, 1, 1]} : vector<9x2x2xf32> to vector<1x2x2xf32>
    %94 = vector.shape_cast %93 : vector<1x2x2xf32> to vector<2x2xf32>
    %cst_52 = arith.constant dense<0.000000e+00> : vector<2x384xf32>
    %95 = tpu.matmul %94, %92, %cst_52 {dimension_numbers = #tpu.dot_dimension_numbers<[1], [0], [0], [1], [0, 0, 1, 1], [], []>} : vector<2x2xf32>, vector<2x384xf32>, vector<2x384xf32> -> vector<2x384xf32>
    %96 = arith.addf %90, %95 : vector<2x384xf32>
    %c0_53 = arith.constant 0 : index
    %c0_54 = arith.constant 0 : index
    %c18_55 = arith.constant 18 : index
    %97 = vector.load %arg2[%c0_53, %c0_54, %c18_55] : memref<1x2x512xf32, #tpu.memory_space<vmem>>, vector<1x2x384xf32>
    %98 = vector.shape_cast %97 : vector<1x2x384xf32> to vector<2x384xf32>
    %99 = vector.extract_strided_slice %4 {offsets = [3, 0, 0], sizes = [1, 2, 2], strides = [1, 1, 1]} : vector<9x2x2xf32> to vector<1x2x2xf32>
    %100 = vector.shape_cast %99 : vector<1x2x2xf32> to vector<2x2xf32>
    %cst_56 = arith.constant dense<0.000000e+00> : vector<2x384xf32>
    %101 = tpu.matmul %100, %98, %cst_56 {dimension_numbers = #tpu.dot_dimension_numbers<[1], [0], [0], [1], [0, 0, 1, 1], [], []>} : vector<2x2xf32>, vector<2x384xf32>, vector<2x384xf32> -> vector<2x384xf32>
    %102 = arith.addf %96, %101 : vector<2x384xf32>
    %c0_57 = arith.constant 0 : index
    %c0_58 = arith.constant 0 : index
    %c19_59 = arith.constant 19 : index
    %103 = vector.load %arg2[%c0_57, %c0_58, %c19_59] : memref<1x2x512xf32, #tpu.memory_space<vmem>>, vector<1x2x384xf32>
    %104 = vector.shape_cast %103 : vector<1x2x384xf32> to vector<2x384xf32>
    %105 = vector.extract_strided_slice %4 {offsets = [4, 0, 0], sizes = [1, 2, 2], strides = [1, 1, 1]} : vector<9x2x2xf32> to vector<1x2x2xf32>
    %106 = vector.shape_cast %105 : vector<1x2x2xf32> to vector<2x2xf32>
    %cst_60 = arith.constant dense<0.000000e+00> : vector<2x384xf32>
    %107 = tpu.matmul %106, %104, %cst_60 {dimension_numbers = #tpu.dot_dimension_numbers<[1], [0], [0], [1], [0, 0, 1, 1], [], []>} : vector<2x2xf32>, vector<2x384xf32>, vector<2x384xf32> -> vector<2x384xf32>
    %108 = arith.addf %102, %107 : vector<2x384xf32>
    %c0_61 = arith.constant 0 : index
    %c0_62 = arith.constant 0 : index
    %c20_63 = arith.constant 20 : index
    %109 = vector.load %arg2[%c0_61, %c0_62, %c20_63] : memref<1x2x512xf32, #tpu.memory_space<vmem>>, vector<1x2x384xf32>
    %110 = vector.shape_cast %109 : vector<1x2x384xf32> to vector<2x384xf32>
    %111 = vector.extract_strided_slice %4 {offsets = [5, 0, 0], sizes = [1, 2, 2], strides = [1, 1, 1]} : vector<9x2x2xf32> to vector<1x2x2xf32>
    %112 = vector.shape_cast %111 : vector<1x2x2xf32> to vector<2x2xf32>
    %cst_64 = arith.constant dense<0.000000e+00> : vector<2x384xf32>
    %113 = tpu.matmul %112, %110, %cst_64 {dimension_numbers = #tpu.dot_dimension_numbers<[1], [0], [0], [1], [0, 0, 1, 1], [], []>} : vector<2x2xf32>, vector<2x384xf32>, vector<2x384xf32> -> vector<2x384xf32>
    %114 = arith.addf %108, %113 : vector<2x384xf32>
    %c0_65 = arith.constant 0 : index
    %c0_66 = arith.constant 0 : index
    %c36_67 = arith.constant 36 : index
    %115 = vector.load %arg2[%c0_65, %c0_66, %c36_67] : memref<1x2x512xf32, #tpu.memory_space<vmem>>, vector<1x2x384xf32>
    %116 = vector.shape_cast %115 : vector<1x2x384xf32> to vector<2x384xf32>
    %117 = vector.extract_strided_slice %4 {offsets = [6, 0, 0], sizes = [1, 2, 2], strides = [1, 1, 1]} : vector<9x2x2xf32> to vector<1x2x2xf32>
    %118 = vector.shape_cast %117 : vector<1x2x2xf32> to vector<2x2xf32>
    %cst_68 = arith.constant dense<0.000000e+00> : vector<2x384xf32>
    %119 = tpu.matmul %118, %116, %cst_68 {dimension_numbers = #tpu.dot_dimension_numbers<[1], [0], [0], [1], [0, 0, 1, 1], [], []>} : vector<2x2xf32>, vector<2x384xf32>, vector<2x384xf32> -> vector<2x384xf32>
    %120 = arith.addf %114, %119 : vector<2x384xf32>
    %c0_69 = arith.constant 0 : index
    %c0_70 = arith.constant 0 : index
    %c37_71 = arith.constant 37 : index
    %121 = vector.load %arg2[%c0_69, %c0_70, %c37_71] : memref<1x2x512xf32, #tpu.memory_space<vmem>>, vector<1x2x384xf32>
    %122 = vector.shape_cast %121 : vector<1x2x384xf32> to vector<2x384xf32>
    %123 = vector.extract_strided_slice %4 {offsets = [7, 0, 0], sizes = [1, 2, 2], strides = [1, 1, 1]} : vector<9x2x2xf32> to vector<1x2x2xf32>
    %124 = vector.shape_cast %123 : vector<1x2x2xf32> to vector<2x2xf32>
    %cst_72 = arith.constant dense<0.000000e+00> : vector<2x384xf32>
    %125 = tpu.matmul %124, %122, %cst_72 {dimension_numbers = #tpu.dot_dimension_numbers<[1], [0], [0], [1], [0, 0, 1, 1], [], []>} : vector<2x2xf32>, vector<2x384xf32>, vector<2x384xf32> -> vector<2x384xf32>
    %126 = arith.addf %120, %125 : vector<2x384xf32>
    %c0_73 = arith.constant 0 : index
    %c0_74 = arith.constant 0 : index
    %c38_75 = arith.constant 38 : index
    %127 = vector.load %arg2[%c0_73, %c0_74, %c38_75] : memref<1x2x512xf32, #tpu.memory_space<vmem>>, vector<1x2x384xf32>
    %128 = vector.shape_cast %127 : vector<1x2x384xf32> to vector<2x384xf32>
    %129 = vector.extract_strided_slice %4 {offsets = [8, 0, 0], sizes = [1, 2, 2], strides = [1, 1, 1]} : vector<9x2x2xf32> to vector<1x2x2xf32>
    %130 = vector.shape_cast %129 : vector<1x2x2xf32> to vector<2x2xf32>
    %cst_76 = arith.constant dense<0.000000e+00> : vector<2x384xf32>
    %131 = tpu.matmul %130, %128, %cst_76 {dimension_numbers = #tpu.dot_dimension_numbers<[1], [0], [0], [1], [0, 0, 1, 1], [], []>} : vector<2x2xf32>, vector<2x384xf32>, vector<2x384xf32> -> vector<2x384xf32>
    %132 = arith.addf %126, %131 : vector<2x384xf32>
    %cst_77 = arith.constant dense<0.000000e+00> : vector<4x384xf32>
    %133 = tpu.matmul %5, %77, %cst_77 {dimension_numbers = #tpu.dot_dimension_numbers<[1], [0], [0], [1], [0, 0, 1, 1], [], []>} : vector<4x2xf32>, vector<2x384xf32>, vector<4x384xf32> -> vector<4x384xf32>
    %cst_78 = arith.constant dense<0.000000e+00> : vector<4x384xf32>
    %134 = tpu.matmul %6, %132, %cst_78 {dimension_numbers = #tpu.dot_dimension_numbers<[1], [0], [0], [1], [0, 0, 1, 1], [], []>} : vector<4x2xf32>, vector<2x384xf32>, vector<4x384xf32> -> vector<4x384xf32>
    %135 = arith.addf %133, %134 : vector<4x384xf32>
    %136 = vector.broadcast %7 : vector<4x1xf32> to vector<4x384xf32>
    %137 = arith.addf %135, %136 : vector<4x384xf32>
    %c0_79 = arith.constant 0 : index
    %c0_80 = arith.constant 0 : index
    %c0_81 = arith.constant 0 : index
    %138 = vector.load %arg11[%c0_79, %c0_80, %c0_81] : memref<1x4x384xf32, #tpu.memory_space<vmem>>, vector<1x4x384xf32>
    %139 = vector.shape_cast %138 : vector<1x4x384xf32> to vector<4x384xf32>
    %140 = vector.shape_cast %137 : vector<4x384xf32> to vector<1x4x384xf32>
    tpu.vector_store %arg11[%c0_79, %c0_80, %c0_81], %140 {strides = array<i32>} : memref<1x4x384xf32, #tpu.memory_space<vmem>>, vector<1x4x384xf32>,
    return
  }
  func.func @transform_0(%arg0: i32) -> (i32, i32, i32) {
    %c0_i32 = arith.constant 0 : i32
    %c0_i32_0 = arith.constant 0 : i32
    %c0_i32_1 = arith.constant 0 : i32
    return %arg0, %c0_i32, %c0_i32_0 : i32, i32, i32
  }
  func.func @transform_1(%arg0: i32) -> (i32, i32, i32) {
    %c0_i32 = arith.constant 0 : i32
    %c0_i32_0 = arith.constant 0 : i32
    %c0_i32_1 = arith.constant 0 : i32
    return %arg0, %c0_i32, %c0_i32_0 : i32, i32, i32
  }
  func.func @transform_2(%arg0: i32) -> (i32, i32) {
    %c0_i32 = arith.constant 0 : i32
    %c0_i32_0 = arith.constant 0 : i32
    %c0_i32_1 = arith.constant 0 : i32
    return %c0_i32, %c0_i32_0 : i32, i32
  }
  func.func @transform_3(%arg0: i32) -> (i32, i32) {
    %c0_i32 = arith.constant 0 : i32
    %c0_i32_0 = arith.constant 0 : i32
    %c0_i32_1 = arith.constant 0 : i32
    return %c0_i32, %c0_i32_0 : i32, i32
  }
  func.func @transform_4(%arg0: i32) -> (i32, i32) {
    %c0_i32 = arith.constant 0 : i32
    %c0_i32_0 = arith.constant 0 : i32
    %c0_i32_1 = arith.constant 0 : i32
    return %c0_i32, %c0_i32_0 : i32, i32
  }
  func.func @transform_5(%arg0: i32) -> (i32, i32) {
    %c0_i32 = arith.constant 0 : i32
    %c0_i32_0 = arith.constant 0 : i32
    %c0_i32_1 = arith.constant 0 : i32
    return %c0_i32, %c0_i32_0 : i32, i32
  }
  func.func @transform_6(%arg0: i32) -> (i32, i32, i32) {
    %c0_i32 = arith.constant 0 : i32
    %c0_i32_0 = arith.constant 0 : i32
    %c0_i32_1 = arith.constant 0 : i32
    %c0_i32_2 = arith.constant 0 : i32
    return %c0_i32, %c0_i32_0, %c0_i32_1 : i32, i32, i32
  }
  func.func @transform_7(%arg0: i32) -> (i32, i32) {
    %c0_i32 = arith.constant 0 : i32
    %c0_i32_0 = arith.constant 0 : i32
    %c0_i32_1 = arith.constant 0 : i32
    return %c0_i32, %c0_i32_0 : i32, i32
  }
  func.func @transform_8(%arg0: i32) -> (i32, i32) {
    %c0_i32 = arith.constant 0 : i32
    %c0_i32_0 = arith.constant 0 : i32
    %c0_i32_1 = arith.constant 0 : i32
    return %c0_i32, %c0_i32_0 : i32, i32
  }
  func.func @transform_9(%arg0: i32) -> (i32, i32) {
    %c0_i32 = arith.constant 0 : i32
    %c0_i32_0 = arith.constant 0 : i32
    %c0_i32_1 = arith.constant 0 : i32
    return %c0_i32, %c0_i32_0 : i32, i32
  }
  func.func @transform_10(%arg0: i32) -> (i32, i32, i32) {
    %c0_i32 = arith.constant 0 : i32
    %c0_i32_0 = arith.constant 0 : i32
    %c0_i32_1 = arith.constant 0 : i32
    return %arg0, %c0_i32, %c0_i32_0 : i32, i32, i32
  }
}

</mosaic_0001>

<llo_original>
// kernel: tpu_custom_call.1
$region0: #{tpu_custom_call.1}
  #allocation0 [shape = 'u32[]', space=smem, size = 0x4, offset = 0x4, fixed_abs, tag = 'smem constant byte address 0x4 - core index']
  #allocation1 [shape = 'u32[72,128]{1,0:T(1,128)}', space=vmem, size = 0x9000, scoped, tag = 'internal scratch']
  #allocation2 [shape = 'f32[1,1]{1,0:T(1,128)S(1)}', space=vmem, size = 0x200, scoped, tag = 'scoped memory for tpu_custom_call.1']
  #allocation3 [shape = 'f32[1,1]{1,0:T(1,128)S(1)}', space=vmem, size = 0x200, scoped, tag = 'scoped memory for tpu_custom_call.1']
  %s0 = inlined_call_operand.vmem [shape: f32[2,2,512], index: 0, kind: input, shape index: {}]
  %s1 = inlined_call_operand.hbm [shape: f32[2,2,512], index: 1, kind: input, shape index: {}]
  %s2 = inlined_call_operand.vmem [shape: f32[1,9], index: 2, kind: input, shape index: {}]
  %s3 = inlined_call_operand.vmem [shape: f32[1,9], index: 3, kind: input, shape index: {}]
  %s4 = inlined_call_operand.<no memory space> [shape: f32[1,1], index: 4, kind: input, shape index: {}]
  %s5 = inlined_call_operand.<no memory space> [shape: f32[1,1], index: 5, kind: input, shape index: {}]
  %s6 = inlined_call_operand.vmem [shape: f32[9,2,2], index: 6, kind: input, shape index: {}]
  %s7 = inlined_call_operand.vmem [shape: f32[4,2], index: 7, kind: input, shape index: {}]
  %s8 = inlined_call_operand.vmem [shape: f32[4,2], index: 8, kind: input, shape index: {}]
  %s9 = inlined_call_operand.vmem [shape: f32[4,1], index: 9, kind: input, shape index: {}]
  %s10 = inlined_call_operand.hbm [shape: f32[2,4,384], index: 10, kind: output, shape index: {}]
  %s11 = sld [smem:[#allocation0]]
  $region77: #{tpu_custom_call.1} parent=0
    _
  %s13 = ssub.s32 1, %s11
  %s14 = scalar_select 0, %s13, %s11
  %v15 = vstv %s4
  %16 = vst [vmem:[#allocation2] sm:$0x1] %v15
  %v17 = vstv %s5
  %18 = vst [vmem:[#allocation3] sm:$0x1] %v17
  $region1: #{tpu_custom_call.1} parent=0
    #allocation4 [shape = 'u8[8192]{0}', space=vmem, size = 0x2000, scoped, tag = 'input window, operand 1']
    #allocation5 [shape = 's32[2]{0}', space=sflag, size = 0x8, scoped, tag = 'scoped memory for tpu_custom_call.1']
    #allocation6 [shape = 's32[2]{0}', space=sflag, size = 0x8, scoped, tag = 'scoped memory for tpu_custom_call.1']
    #allocation7 [shape = 'u8[12288]{0}', space=vmem, size = 0x3000, scoped, tag = 'output window, operand 0']
    %19 = vsyncpa [#allocation5], 0
    %s20 = scalar_lea.sflag [#allocation5], 1
    %21 = vsyncpa %s20, 0
    %22 = vsyncpa [#allocation6], 0
    %s23 = scalar_lea.sflag [#allocation6], 1
    %24 = vsyncpa %s23, 0
    loop: start=0, step=1, limit=4
    $region2: #{tpu_custom_call.1} parent=1 // loop_pre_header
      _
    $region3: #{tpu_custom_call.1} parent=1 // loop_header
      %s26 = sphi 0, %s30
      %p27 = scmp.ge.s32.totalorder %s26, 4
      %s36 = sphi 0, %s38
      %s39 = sphi 0, %s36
      %s40 = sphi 0, %s39
      %s56 = sphi 0, %s40
      %s62 = sphi 0, %s64
      %s65 = sphi 0, %s62
      %s66 = sphi 0, %s65
      %s82 = sphi 0, %s66
      %s86 = sphi 0, %s86
      %s88 = sphi 0, %s86
      %s89 = sphi 0, %s88
      %s103 = sphi 0, %s89
      %s107 = sphi 0, %s107
      %s109 = sphi 0, %s107
      %s110 = sphi 0, %s109
      %s124 = sphi 0, %s110
      %s128 = sphi 0, %s128
      %s130 = sphi 0, %s128
      %s131 = sphi 0, %s130
      %s145 = sphi 0, %s131
      %s149 = sphi 0, %s149
      %s151 = sphi 0, %s149
      %s152 = sphi 0, %s151
      %s166 = sphi 0, %s152
      %s170 = sphi 0, %s170
      %s172 = sphi 0, %s170
      %s173 = sphi 0, %s172
      %s187 = sphi 0, %s173
      %s191 = sphi 0, %s191
      %s193 = sphi 0, %s191
      %s194 = sphi 0, %s193
      %s208 = sphi 0, %s194
      %s212 = sphi 0, %s212
      %s214 = sphi 0, %s212
      %s215 = sphi 0, %s214
      %s229 = sphi 0, %s215
      %s233 = sphi 0, %s233
      %s235 = sphi 0, %s233
      %s236 = sphi 0, %s235
      %s250 = sphi 0, %s236
      %s256 = sphi 0, %s258
      %s259 = sphi 0, %s256
      %s260 = sphi 0, %s259
      %s276 = sphi 0, %s260
    $region4: #{tpu_custom_call.1} parent=1 // loop_header_branch
      %29 = sbr.rel (%p27) target = $region8
    $region5: #{tpu_custom_call.1} parent=1 // loop_body
      %s31 = ssub.s32 %s26, 1
      %s32 = ssub.s32 %s26, 2
      %s33 = sadd.s32 %s26, 1
      %s34 = ssub.s32 %s26, %s33
      %p35 = scmp.eq.s32.totalorder %s34, 0
      %s37 = sadd.s32 %s36, 1
      %s38 = scalar_select %p35, %s36, %s37
      %p41 = pneg %p35
      %p42 = scmp.eq.s32.totalorder %s26, 1
      %p43 = por %p41, %p42
      %p44 = scmp.ne.s32.totalorder %s36, %s39
      %p45 = scmp.eq.s32.totalorder %s26, 0
      %p46 = por %p44, %p45
      %p47 = scmp.ne.s32.totalorder %s36, %s39
      %p48 = scmp.eq.s32.totalorder %s31, 1
      %p49 = por %p47, %p48
      %p50 = scmp.ne.s32.totalorder %s39, %s40
      %p51 = scmp.eq.s32.totalorder %s31, 0
      %p52 = por %p50, %p51
      %p53 = scmp.ne.s32.totalorder %s39, %s40
      %p54 = scmp.eq.s32.totalorder %s32, 1
      %p55 = por %p53, %p54
      %p57 = scmp.ne.s32.totalorder %s40, %s56
      %p58 = scmp.eq.s32.totalorder %s32, 0
      %p59 = por %p57, %p58
      %s60 = ssub.s32 %s26, %s33
      %p61 = scmp.eq.s32.totalorder %s60, 0
      %s63 = sadd.s32 %s62, 1
      %s64 = scalar_select %p61, %s62, %s63
      %p67 = pneg %p61
      %p68 = scmp.eq.s32.totalorder %s26, 1
      %p69 = por %p67, %p68
      %p70 = scmp.ne.s32.totalorder %s62, %s65
      %p71 = scmp.eq.s32.totalorder %s26, 0
      %p72 = por %p70, %p71
      %p73 = scmp.ne.s32.totalorder %s62, %s65
      %p74 = scmp.eq.s32.totalorder %s31, 1
      %p75 = por %p73, %p74
      %p76 = scmp.ne.s32.totalorder %s65, %s66
      %p77 = scmp.eq.s32.totalorder %s31, 0
      %p78 = por %p76, %p77
      %p79 = scmp.ne.s32.totalorder %s65, %s66
      %p80 = scmp.eq.s32.totalorder %s32, 1
      %p81 = por %p79, %p80
      %p83 = scmp.ne.s32.totalorder %s66, %s82
      %p84 = scmp.eq.s32.totalorder %s32, 0
      %p85 = por %p83, %p84
      %s87 = sadd.s32 %s86, 1
      %p90 = scmp.eq.s32.totalorder %s26, 1
      %p91 = scmp.ne.s32.totalorder %s86, %s88
      %p92 = scmp.eq.s32.totalorder %s26, 0
      %p93 = por %p91, %p92
      %p94 = scmp.ne.s32.totalorder %s86, %s88
      %p95 = scmp.eq.s32.totalorder %s31, 1
      %p96 = por %p94, %p95
      %p97 = scmp.ne.s32.totalorder %s88, %s89
      %p98 = scmp.eq.s32.totalorder %s31, 0
      %p99 = por %p97, %p98
      %p100 = scmp.ne.s32.totalorder %s88, %s89
      %p101 = scmp.eq.s32.totalorder %s32, 1
      %p102 = por %p100, %p101
      %p104 = scmp.ne.s32.totalorder %s89, %s103
      %p105 = scmp.eq.s32.totalorder %s32, 0
      %p106 = por %p104, %p105
      %s108 = sadd.s32 %s107, 1
      %p111 = scmp.eq.s32.totalorder %s26, 1
      %p112 = scmp.ne.s32.totalorder %s107, %s109
      %p113 = scmp.eq.s32.totalorder %s26, 0
      %p114 = por %p112, %p113
      %p115 = scmp.ne.s32.totalorder %s107, %s109
      %p116 = scmp.eq.s32.totalorder %s31, 1
      %p117 = por %p115, %p116
      %p118 = scmp.ne.s32.totalorder %s109, %s110
      %p119 = scmp.eq.s32.totalorder %s31, 0
      %p120 = por %p118, %p119
      %p121 = scmp.ne.s32.totalorder %s109, %s110
      %p122 = scmp.eq.s32.totalorder %s32, 1
      %p123 = por %p121, %p122
      %p125 = scmp.ne.s32.totalorder %s110, %s124
      %p126 = scmp.eq.s32.totalorder %s32, 0
      %p127 = por %p125, %p126
      %s129 = sadd.s32 %s128, 1
      %p132 = scmp.eq.s32.totalorder %s26, 1
      %p133 = scmp.ne.s32.totalorder %s128, %s130
      %p134 = scmp.eq.s32.totalorder %s26, 0
      %p135 = por %p133, %p134
      %p136 = scmp.ne.s32.totalorder %s128, %s130
      %p137 = scmp.eq.s32.totalorder %s31, 1
      %p138 = por %p136, %p137
      %p139 = scmp.ne.s32.totalorder %s130, %s131
      %p140 = scmp.eq.s32.totalorder %s31, 0
      %p141 = por %p139, %p140
      %p142 = scmp.ne.s32.totalorder %s130, %s131
      %p143 = scmp.eq.s32.totalorder %s32, 1
      %p144 = por %p142, %p143
      %p146 = scmp.ne.s32.totalorder %s131, %s145
      %p147 = scmp.eq.s32.totalorder %s32, 0
      %p148 = por %p146, %p147
      %s150 = sadd.s32 %s149, 1
      %p153 = scmp.eq.s32.totalorder %s26, 1
      %p154 = scmp.ne.s32.totalorder %s149, %s151
      %p155 = scmp.eq.s32.totalorder %s26, 0
      %p156 = por %p154, %p155
      %p157 = scmp.ne.s32.totalorder %s149, %s151
      %p158 = scmp.eq.s32.totalorder %s31, 1
      %p159 = por %p157, %p158
      %p160 = scmp.ne.s32.totalorder %s151, %s152
      %p161 = scmp.eq.s32.totalorder %s31, 0
      %p162 = por %p160, %p161
      %p163 = scmp.ne.s32.totalorder %s151, %s152
      %p164 = scmp.eq.s32.totalorder %s32, 1
      %p165 = por %p163, %p164
      %p167 = scmp.ne.s32.totalorder %s152, %s166
      %p168 = scmp.eq.s32.totalorder %s32, 0
      %p169 = por %p167, %p168
      %s171 = sadd.s32 %s170, 1
      %p174 = scmp.eq.s32.totalorder %s26, 1
      %p175 = scmp.ne.s32.totalorder %s170, %s172
      %p176 = scmp.eq.s32.totalorder %s26, 0
      %p177 = por %p175, %p176
      %p178 = scmp.ne.s32.totalorder %s170, %s172
      %p179 = scmp.eq.s32.totalorder %s31, 1
      %p180 = por %p178, %p179
      %p181 = scmp.ne.s32.totalorder %s172, %s173
      %p182 = scmp.eq.s32.totalorder %s31, 0
      %p183 = por %p181, %p182
      %p184 = scmp.ne.s32.totalorder %s172, %s173
      %p185 = scmp.eq.s32.totalorder %s32, 1
      %p186 = por %p184, %p185
      %p188 = scmp.ne.s32.totalorder %s173, %s187
      %p189 = scmp.eq.s32.totalorder %s32, 0
      %p190 = por %p188, %p189
      %s192 = sadd.s32 %s191, 1
      %p195 = scmp.eq.s32.totalorder %s26, 1
      %p196 = scmp.ne.s32.totalorder %s191, %s193
      %p197 = scmp.eq.s32.totalorder %s26, 0
      %p198 = por %p196, %p197
      %p199 = scmp.ne.s32.totalorder %s191, %s193
      %p200 = scmp.eq.s32.totalorder %s31, 1
      %p201 = por %p199, %p200
      %p202 = scmp.ne.s32.totalorder %s193, %s194
      %p203 = scmp.eq.s32.totalorder %s31, 0
      %p204 = por %p202, %p203
      %p205 = scmp.ne.s32.totalorder %s193, %s194
      %p206 = scmp.eq.s32.totalorder %s32, 1
      %p207 = por %p205, %p206
      %p209 = scmp.ne.s32.totalorder %s194, %s208
      %p210 = scmp.eq.s32.totalorder %s32, 0
      %p211 = por %p209, %p210
      %s213 = sadd.s32 %s212, 1
      %p216 = scmp.eq.s32.totalorder %s26, 1
      %p217 = scmp.ne.s32.totalorder %s212, %s214
      %p218 = scmp.eq.s32.totalorder %s26, 0
      %p219 = por %p217, %p218
      %p220 = scmp.ne.s32.totalorder %s212, %s214
      %p221 = scmp.eq.s32.totalorder %s31, 1
      %p222 = por %p220, %p221
      %p223 = scmp.ne.s32.totalorder %s214, %s215
      %p224 = scmp.eq.s32.totalorder %s31, 0
      %p225 = por %p223, %p224
      %p226 = scmp.ne.s32.totalorder %s214, %s215
      %p227 = scmp.eq.s32.totalorder %s32, 1
      %p228 = por %p226, %p227
      %p230 = scmp.ne.s32.totalorder %s215, %s229
      %p231 = scmp.eq.s32.totalorder %s32, 0
      %p232 = por %p230, %p231
      %s234 = sadd.s32 %s233, 1
      %p237 = scmp.eq.s32.totalorder %s26, 1
      %p238 = scmp.ne.s32.totalorder %s233, %s235
      %p239 = scmp.eq.s32.totalorder %s26, 0
      %p240 = por %p238, %p239
      %p241 = scmp.ne.s32.totalorder %s233, %s235
      %p242 = scmp.eq.s32.totalorder %s31, 1
      %p243 = por %p241, %p242
      %p244 = scmp.ne.s32.totalorder %s235, %s236
      %p245 = scmp.eq.s32.totalorder %s31, 0
      %p246 = por %p244, %p245
      %p247 = scmp.ne.s32.totalorder %s235, %s236
      %p248 = scmp.eq.s32.totalorder %s32, 1
      %p249 = por %p247, %p248
      %p251 = scmp.ne.s32.totalorder %s236, %s250
      %p252 = scmp.eq.s32.totalorder %s32, 0
      %p253 = por %p251, %p252
      %s254 = ssub.s32 %s26, %s33
      %p255 = scmp.eq.s32.totalorder %s254, 0
      %s257 = sadd.s32 %s256, 1
      %s258 = scalar_select %p255, %s256, %s257
      %p261 = pneg %p255
      %p262 = scmp.eq.s32.totalorder %s26, 1
      %p263 = por %p261, %p262
      %p264 = scmp.ne.s32.totalorder %s256, %s259
      %p265 = scmp.eq.s32.totalorder %s26, 0
      %p266 = por %p264, %p265
      %p267 = scmp.ne.s32.totalorder %s256, %s259
      %p268 = scmp.eq.s32.totalorder %s31, 1
      %p269 = por %p267, %p268
      %p270 = scmp.ne.s32.totalorder %s259, %s260
      %p271 = scmp.eq.s32.totalorder %s31, 0
      %p272 = por %p270, %p271
      %p273 = scmp.ne.s32.totalorder %s259, %s260
      %p274 = scmp.eq.s32.totalorder %s32, 1
      %p275 = por %p273, %p274
      %p277 = scmp.ne.s32.totalorder %s260, %s276
      %p278 = scmp.eq.s32.totalorder %s32, 0
      %p279 = por %p277, %p278
      %p280 = scmp.le.s32.totalorder 1, %s26
      %p281 = scmp.lt.s32.totalorder %s26, 3
      %p282 = pnand %p280, %p281
      %p283 = pneg %p282
      // Predicated region
      $region9: #{tpu_custom_call.1} parent=5 // pred_check
        _
      $region10: #{tpu_custom_call.1} parent=5 // pred_check_branch
        %285 = sbr.rel (%p282) target = $region12
      $region11: #{tpu_custom_call.1} parent=5 // pred_region
        %s286 = ssub.s32 %s26, 1
        // Predicated region
        $region13: #{tpu_custom_call.1} parent=11 // pred_check
          %p287 = pneg %p99
        $region14: #{tpu_custom_call.1} parent=11 // pred_check_branch
          %289 = sbr.rel (%p287) target = $region16
        $region15: #{tpu_custom_call.1} parent=11 // pred_region
          _
        $region16: #{tpu_custom_call.1} parent=11 // pred_fallthru
          _
        // Predicated region
        $region17: #{tpu_custom_call.1} parent=11 // pred_check
          %p290 = pneg %p120
        $region18: #{tpu_custom_call.1} parent=11 // pred_check_branch
          %292 = sbr.rel (%p290) target = $region20
        $region19: #{tpu_custom_call.1} parent=11 // pred_region
          _
        $region20: #{tpu_custom_call.1} parent=11 // pred_fallthru
          _
        // Predicated region
        $region21: #{tpu_custom_call.1} parent=11 // pred_check
          %p293 = pneg %p141
        $region22: #{tpu_custom_call.1} parent=11 // pred_check_branch
          %295 = sbr.rel (%p293) target = $region24
        $region23: #{tpu_custom_call.1} parent=11 // pred_region
          _
        $region24: #{tpu_custom_call.1} parent=11 // pred_fallthru
          _
        // Predicated region
        $region25: #{tpu_custom_call.1} parent=11 // pred_check
          %p296 = pneg %p162
        $region26: #{tpu_custom_call.1} parent=11 // pred_check_branch
          %298 = sbr.rel (%p296) target = $region28
        $region27: #{tpu_custom_call.1} parent=11 // pred_region
          _
        $region28: #{tpu_custom_call.1} parent=11 // pred_fallthru
          _
        // Predicated region
        $region29: #{tpu_custom_call.1} parent=11 // pred_check
          %p299 = pneg %p183
        $region30: #{tpu_custom_call.1} parent=11 // pred_check_branch
          %301 = sbr.rel (%p299) target = $region32
        $region31: #{tpu_custom_call.1} parent=11 // pred_region
          _
        $region32: #{tpu_custom_call.1} parent=11 // pred_fallthru
          _
        // Predicated region
        $region33: #{tpu_custom_call.1} parent=11 // pred_check
          %p302 = pneg %p204
        $region34: #{tpu_custom_call.1} parent=11 // pred_check_branch
          %304 = sbr.rel (%p302) target = $region36
        $region35: #{tpu_custom_call.1} parent=11 // pred_region
          _
        $region36: #{tpu_custom_call.1} parent=11 // pred_fallthru
          _
        // Predicated region
        $region37: #{tpu_custom_call.1} parent=11 // pred_check
          %p305 = pneg %p225
        $region38: #{tpu_custom_call.1} parent=11 // pred_check_branch
          %307 = sbr.rel (%p305) target = $region40
        $region39: #{tpu_custom_call.1} parent=11 // pred_region
          _
        $region40: #{tpu_custom_call.1} parent=11 // pred_fallthru
          _
        // Predicated region
        $region41: #{tpu_custom_call.1} parent=11 // pred_check
          %p308 = pneg %p246
        $region42: #{tpu_custom_call.1} parent=11 // pred_check_branch
          %310 = sbr.rel (%p308) target = $region44
        $region43: #{tpu_custom_call.1} parent=11 // pred_region
          _
        $region44: #{tpu_custom_call.1} parent=11 // pred_fallthru
          _
      $region12: #{tpu_custom_call.1} parent=5 // pred_fallthru
        _
      %p311 = scmp.lt.s32.totalorder %s26, 2
      // Predicated region
      $region45: #{tpu_custom_call.1} parent=5 // pred_check
        %p312 = pneg %p311
      $region46: #{tpu_custom_call.1} parent=5 // pred_check_branch
        %314 = sbr.rel (%p312) target = $region48
      $region47: #{tpu_custom_call.1} parent=5 // pred_region
        // Predicated region
        $region49: #{tpu_custom_call.1} parent=47 // pred_check
          %p315 = pneg %p46
        $region50: #{tpu_custom_call.1} parent=47 // pred_check_branch
          %317 = sbr.rel (%p315) target = $region52
        $region51: #{tpu_custom_call.1} parent=47 // pred_region
          %p318 = scmp.lt.s32.totalorder %s26, 1
          %s319 = scalar_select %p318, %s26, 1
          %s320 = smul.addr %s319, 4
          %s321 = smul.addr %s320, 2
          %s322 = scalar_lea.vmem %s0, %s321
        $region52: #{tpu_custom_call.1} parent=47 // pred_fallthru
          _
        // Predicated region
        $region53: #{tpu_custom_call.1} parent=47 // pred_check
          %p323 = pneg %p72
        $region54: #{tpu_custom_call.1} parent=47 // pred_check_branch
          %325 = sbr.rel (%p323) target = $region56
        $region55: #{tpu_custom_call.1} parent=47 // pred_region
          %s326 = sand.u32 %s62, 1
          %s327 = scalar_lea.sflag [#allocation5], %s326
          %s328 = sand.u32 %s62, 1
          %s329 = smul.addr %s328, 8
          %s330 = scalar_lea.vmem [#allocation4], %s329
          %332 = vsyncadd %s327, 0
          %s333 = smul.addr %s26, 4
          %s334 = smul.addr %s333, 2
          %s335 = scalar_lea.hbm %s1, %s334
          %s337 = sshll.u32 %s335, 4
          %s338 = int_to_ptr.hbm [resolvable:$true] %s337
          %s339 = sshll.u32 %s330, 4
          %s340 = int_to_ptr.vmem [resolvable:$true] %s339
          %342 = dma.hbm_to_vmem [thread:$0]  %s338, 128, %s340, %s327
        $region56: #{tpu_custom_call.1} parent=47 // pred_fallthru
          _
      $region48: #{tpu_custom_call.1} parent=5 // pred_fallthru
        _
      %p343 = scmp.le.s32.totalorder 1, %s26
      %p344 = scmp.lt.s32.totalorder %s26, 3
      %p345 = pnand %p343, %p344
      %p346 = pneg %p345
      // Predicated region
      $region57: #{tpu_custom_call.1} parent=5 // pred_check
        _
      $region58: #{tpu_custom_call.1} parent=5 // pred_check_branch
        %348 = sbr.rel (%p345) target = $region60
      $region59: #{tpu_custom_call.1} parent=5 // pred_region
        %s349 = ssub.s32 %s26, 1
        %s350 = sand.u32 %s65, 1
        %s351 = scalar_lea.sflag [#allocation5], %s350
        %s352 = sand.u32 %s65, 1
        %s353 = smul.addr %s352, 8
        %s354 = scalar_lea.vmem [#allocation4], %s353
        // Predicated region
        $region61: #{tpu_custom_call.1} parent=59 // pred_check
          %p355 = pneg %p78
        $region62: #{tpu_custom_call.1} parent=59 // pred_check_branch
          %357 = sbr.rel (%p355) target = $region64
        $region63: #{tpu_custom_call.1} parent=59 // pred_region
          %359 = dma.done %s351, 128
        $region64: #{tpu_custom_call.1} parent=59 // pred_fallthru
          _
        %p360 = scmp.lt.s32.totalorder %s31, 1
        %s361 = scalar_select %p360, %s31, 1
        %s362 = smul.addr %s361, 4
        %s363 = smul.addr %s362, 2
        %s364 = scalar_lea.vmem %s0, %s363
        %p365 = pneg %p52
        %p366 = pneg %p49
        %s367 = sand.u32 %s65, 1
        %s368 = scalar_lea.sflag [#allocation5], %s367
        %s369 = sand.u32 %s65, 1
        %s370 = smul.addr %s369, 8
        %s371 = scalar_lea.vmem [#allocation4], %s370
        %p372 = pneg %p78
        %p373 = pneg %p75
        %p374 = pneg %p99
        %p375 = pneg %p96
        %p376 = pneg %p120
        %p377 = pneg %p117
        %p378 = pneg %p141
        %p379 = pneg %p138
        %p380 = pneg %p162
        %p381 = pneg %p159
        %p382 = pneg %p183
        %p383 = pneg %p180
        %p384 = pneg %p204
        %p385 = pneg %p201
        %p386 = pneg %p225
        %p387 = pneg %p222
        %p388 = pneg %p246
        %p389 = pneg %p243
        %p390 = pneg %p272
        %p391 = pneg %p269
        %s392 = sand.u32 %s259, 1
        %s393 = scalar_lea.sflag [#allocation6], %s392
        %s394 = sand.u32 %s259, 1
        %s395 = smul.addr %s394, 12
        %s396 = scalar_lea.vmem [#allocation7], %s395
        %p397 = scmp.lt.s32.totalorder %s31, 1
        %s398 = scalar_select %p397, %s31, 1
        %s399 = smul.addr %s398, 4
        %s400 = smul.addr %s399, 2
        %s401 = scalar_lea.vmem %s0, %s400
        %v402 = vld [vmem:[%s2] sm:$0x1]
        %v403 = vld [vmem:[%s3] sm:$0x1]
        %v404 = vld [vmem:[#allocation2] sm:$0x1]
        %v405 = vld [vmem:[#allocation3] sm:$0x1]
        %v406 = vld [vmem:[%s6] sm:$0x3]
        %v407 = vld [vmem:[%s6 + $0x2] sm:$0x3]
        %v408 = vld [vmem:[%s6 + $0x4] sm:$0x3]
        %v409 = vld [vmem:[%s6 + $0x6] sm:$0x3]
        %v410 = vld [vmem:[%s6 + $0x8] sm:$0x3]
        %v411 = vld [vmem:[%s6 + $0xa] sm:$0x3]
        %v412 = vld [vmem:[%s6 + $0xc] sm:$0x3]
        %v413 = vld [vmem:[%s6 + $0xe] sm:$0x3]
        %v414 = vld [vmem:[%s6 + $0x10] sm:$0x3]
        %v415 = vld [vmem:[%s7] sm:$0xf]
        %v416 = vld [vmem:[%s8] sm:$0xf]
        %v417 = vld [vmem:[%s9] sm:$0xf]
        %v418 = vld [vmem:[%s401] sm:$0xff]
        %420 = vst [vmem:[#allocation1] ss:$4 sm:$0xff] %v418
        %v421 = vld.sshfl [vmem:[#allocation1] sm:$0xff pattern:$0x73625140]
        %v422 = vld.sshfl [vmem:[#allocation1 + $0x8] sm:$0xff pattern:$0x73625140]
        %v423 = vld.sshfl [vmem:[#allocation1 + $0x10] sm:$0xff pattern:$0x73625140]
        %v424 = vld.sshfl [vmem:[#allocation1 + $0x18] sm:$0xff pattern:$0x73625140]
        %vm429 = vcmask 1041408
        %v430 = vsel %vm429, %v421, 0.0
        %v431 = vsel %vm429, %v422, 0.0
        %v432 = vadd.f32 %v430, %v431
        %v433 = vsel %vm429, %v423, 0.0
        %v434 = vadd.f32 %v432, %v433
        %v435 = vsel %vm429, %v424, 0.0
        %v436 = vadd.f32 %v434, %v435
        %437 = vadd.xlane.f32.xlu0 %v436
        %v438 = vpop.xlane.xlu0 %437
        %v439 = vmul.f32 %v438, 0.00390625
        %v441 = vperm.slane %v402, 0
        %v443 = vmul.f32 %v439, %v441
        %v445 = vperm.slane %v403, 0
        %v447 = vadd.f32 %v443, %v445
        %v449 = vperm.slane %v404, 0
        %450 = vset.pattern.permute.xlu0 0
        %451 = vperm.xlu0 %450, %v449
        %v452 = vpop.permute.xlu0 %451
        %v454 = vmul.f32 %v452, %v447
        %v456 = vperm.slane %v405, 0
        %457 = vset.pattern.permute.xlu0 0
        %458 = vperm.xlu0 %457, %v456
        %v459 = vpop.permute.xlu0 %458
        %v461 = vadd.f32 %v454, %v459
        %v462 = vld [vmem:[%s401] sm:$0x3f]
        %464 = vset.pattern.permute.xlu0 0
        %465 = vperm.xlu0 %464, %v461
        %v466 = vpop.permute.xlu0 %465
        %469 = vst [vmem:[#allocation1] ss:$4 sm:$0xff] %v462
        %v470 = vld.sshfl [vmem:[#allocation1] sm:$0xff pattern:$0x73625140]
        %v471 = vld.sshfl [vmem:[#allocation1 + $0x8] sm:$0xff pattern:$0x73625140]
        %v472 = vld.sshfl [vmem:[#allocation1 + $0x10] sm:$0xff pattern:$0x73625140]
        %v476 = vmul.f32 %v466, %v470
        %v477 = vmul.f32 %v466, %v471
        %v478 = vmul.f32 %v466, %v472
        %v479 = vadd.f32 %v476, 0.0
        %v480 = vadd.f32 %v477, 0.0
        %v481 = vadd.f32 %v478, 0.0
        %v482 = vld [vmem:[%s401] sm:$0xff]
        %483 = vset.pattern.permute.xlu0 1
        %484 = vperm.xlu0 %483, %v461
        %v485 = vpop.permute.xlu0 %484
        %488 = vst [vmem:[#allocation1] ss:$4 sm:$0xff] %v482
        %v489 = vld.sshfl [vmem:[#allocation1] sm:$0xff pattern:$0x73625140]
        %v490 = vld.sshfl [vmem:[#allocation1 + $0x8] sm:$0xff pattern:$0x73625140]
        %v491 = vld.sshfl [vmem:[#allocation1 + $0x10] sm:$0xff pattern:$0x73625140]
        %v492 = vld.sshfl [vmem:[#allocation1 + $0x18] sm:$0xff pattern:$0x73625140]
        %493 = vrot.lane.b32.xlu0 %v489, 127
        %v494 = vpop.permute.xlu0 %493
        %495 = vrot.lane.b32.xlu0 %v490, 127
        %v496 = vpop.permute.xlu0 %495
        %497 = vrot.lane.b32.xlu0 %v491, 127
        %v498 = vpop.permute.xlu0 %497
        %499 = vrot.lane.b32.xlu0 %v492, 127
        %v500 = vpop.permute.xlu0 %499
        %vm501 = vcmask 1039360
        %v502 = vsel %vm501, %v494, %v496
        %v503 = vsel %vm501, %v496, %v498
        %v504 = vsel %vm501, %v498, %v500
        %v508 = vmul.f32 %v485, %v502
        %v509 = vmul.f32 %v485, %v503
        %v510 = vmul.f32 %v485, %v504
        %v511 = vadd.f32 %v479, %v508
        %v512 = vadd.f32 %v480, %v509
        %v513 = vadd.f32 %v481, %v510
        %v514 = vld [vmem:[%s401] sm:$0xff]
        %515 = vset.pattern.permute.xlu0 2
        %516 = vperm.xlu0 %515, %v461
        %v517 = vpop.permute.xlu0 %516
        %520 = vst [vmem:[#allocation1] ss:$4 sm:$0xff] %v514
        %v521 = vld.sshfl [vmem:[#allocation1] sm:$0xff pattern:$0x73625140]
        %v522 = vld.sshfl [vmem:[#allocation1 + $0x8] sm:$0xff pattern:$0x73625140]
        %v523 = vld.sshfl [vmem:[#allocation1 + $0x10] sm:$0xff pattern:$0x73625140]
        %v524 = vld.sshfl [vmem:[#allocation1 + $0x18] sm:$0xff pattern:$0x73625140]
        %525 = vrot.lane.b32.xlu0 %v521, 126
        %v526 = vpop.permute.xlu0 %525
        %527 = vrot.lane.b32.xlu0 %v522, 126
        %v528 = vpop.permute.xlu0 %527
        %529 = vrot.lane.b32.xlu0 %v523, 126
        %v530 = vpop.permute.xlu0 %529
        %531 = vrot.lane.b32.xlu0 %v524, 126
        %v532 = vpop.permute.xlu0 %531
        %vm533 = vcmask 1031168
        %v534 = vsel %vm533, %v526, %v528
        %v535 = vsel %vm533, %v528, %v530
        %v536 = vsel %vm533, %v530, %v532
        %v540 = vmul.f32 %v517, %v534
        %v541 = vmul.f32 %v517, %v535
        %v542 = vmul.f32 %v517, %v536
        %v543 = vadd.f32 %v511, %v540
        %v544 = vadd.f32 %v512, %v541
        %v545 = vadd.f32 %v513, %v542
        %v546 = vld [vmem:[%s401] sm:$0xff]
        %547 = vset.pattern.permute.xlu0 3
        %548 = vperm.xlu0 %547, %v461
        %v549 = vpop.permute.xlu0 %548
        %552 = vst [vmem:[#allocation1] ss:$4 sm:$0xff] %v546
        %v553 = vld.sshfl [vmem:[#allocation1] sm:$0xff pattern:$0x73625140]
        %v554 = vld.sshfl [vmem:[#allocation1 + $0x8] sm:$0xff pattern:$0x73625140]
        %v555 = vld.sshfl [vmem:[#allocation1 + $0x10] sm:$0xff pattern:$0x73625140]
        %v556 = vld.sshfl [vmem:[#allocation1 + $0x18] sm:$0xff pattern:$0x73625140]
        %557 = vrot.lane.b32.xlu0 %v553, 110
        %v558 = vpop.permute.xlu0 %557
        %559 = vrot.lane.b32.xlu0 %v554, 110
        %v560 = vpop.permute.xlu0 %559
        %561 = vrot.lane.b32.xlu0 %v555, 110
        %v562 = vpop.permute.xlu0 %561
        %563 = vrot.lane.b32.xlu0 %v556, 110
        %v564 = vpop.permute.xlu0 %563
        %vm565 = vcmask 900096
        %v566 = vsel %vm565, %v558, %v560
        %v567 = vsel %vm565, %v560, %v562
        %v568 = vsel %vm565, %v562, %v564
        %v572 = vmul.f32 %v549, %v566
        %v573 = vmul.f32 %v549, %v567
        %v574 = vmul.f32 %v549, %v568
        %v575 = vadd.f32 %v543, %v572
        %v576 = vadd.f32 %v544, %v573
        %v577 = vadd.f32 %v545, %v574
        %v578 = vld [vmem:[%s401] sm:$0xff]
        %579 = vset.pattern.permute.xlu0 4
        %580 = vperm.xlu0 %579, %v461
        %v581 = vpop.permute.xlu0 %580
        %584 = vst [vmem:[#allocation1] ss:$4 sm:$0xff] %v578
        %v585 = vld.sshfl [vmem:[#allocation1] sm:$0xff pattern:$0x73625140]
        %v586 = vld.sshfl [vmem:[#allocation1 + $0x8] sm:$0xff pattern:$0x73625140]
        %v587 = vld.sshfl [vmem:[#allocation1 + $0x10] sm:$0xff pattern:$0x73625140]
        %v588 = vld.sshfl [vmem:[#allocation1 + $0x18] sm:$0xff pattern:$0x73625140]
        %589 = vrot.lane.b32.xlu0 %v585, 109
        %v590 = vpop.permute.xlu0 %589
        %591 = vrot.lane.b32.xlu0 %v586, 109
        %v592 = vpop.permute.xlu0 %591
        %593 = vrot.lane.b32.xlu0 %v587, 109
        %v594 = vpop.permute.xlu0 %593
        %595 = vrot.lane.b32.xlu0 %v588, 109
        %v596 = vpop.permute.xlu0 %595
        %vm597 = vcmask 891904
        %v598 = vsel %vm597, %v590, %v592
        %v599 = vsel %vm597, %v592, %v594
        %v600 = vsel %vm597, %v594, %v596
        %v604 = vmul.f32 %v581, %v598
        %v605 = vmul.f32 %v581, %v599
        %v606 = vmul.f32 %v581, %v600
        %v607 = vadd.f32 %v575, %v604
        %v608 = vadd.f32 %v576, %v605
        %v609 = vadd.f32 %v577, %v606
        %v610 = vld [vmem:[%s401] sm:$0xff]
        %611 = vset.pattern.permute.xlu0 5
        %612 = vperm.xlu0 %611, %v461
        %v613 = vpop.permute.xlu0 %612
        %616 = vst [vmem:[#allocation1] ss:$4 sm:$0xff] %v610
        %v617 = vld.sshfl [vmem:[#allocation1] sm:$0xff pattern:$0x73625140]
        %v618 = vld.sshfl [vmem:[#allocation1 + $0x8] sm:$0xff pattern:$0x73625140]
        %v619 = vld.sshfl [vmem:[#allocation1 + $0x10] sm:$0xff pattern:$0x73625140]
        %v620 = vld.sshfl [vmem:[#allocation1 + $0x18] sm:$0xff pattern:$0x73625140]
        %621 = vrot.lane.b32.xlu0 %v617, 108
        %v622 = vpop.permute.xlu0 %621
        %623 = vrot.lane.b32.xlu0 %v618, 108
        %v624 = vpop.permute.xlu0 %623
        %625 = vrot.lane.b32.xlu0 %v619, 108
        %v626 = vpop.permute.xlu0 %625
        %627 = vrot.lane.b32.xlu0 %v620, 108
        %v628 = vpop.permute.xlu0 %627
        %vm629 = vcmask 883712
        %v630 = vsel %vm629, %v622, %v624
        %v631 = vsel %vm629, %v624, %v626
        %v632 = vsel %vm629, %v626, %v628
        %v636 = vmul.f32 %v613, %v630
        %v637 = vmul.f32 %v613, %v631
        %v638 = vmul.f32 %v613, %v632
        %v639 = vadd.f32 %v607, %v636
        %v640 = vadd.f32 %v608, %v637
        %v641 = vadd.f32 %v609, %v638
        %v642 = vld [vmem:[%s401] sm:$0xff]
        %643 = vset.pattern.permute.xlu0 6
        %644 = vperm.xlu0 %643, %v461
        %v645 = vpop.permute.xlu0 %644
        %648 = vst [vmem:[#allocation1] ss:$4 sm:$0xff] %v642
        %v649 = vld.sshfl [vmem:[#allocation1] sm:$0xff pattern:$0x73625140]
        %v650 = vld.sshfl [vmem:[#allocation1 + $0x8] sm:$0xff pattern:$0x73625140]
        %v651 = vld.sshfl [vmem:[#allocation1 + $0x10] sm:$0xff pattern:$0x73625140]
        %v652 = vld.sshfl [vmem:[#allocation1 + $0x18] sm:$0xff pattern:$0x73625140]
        %653 = vrot.lane.b32.xlu0 %v649, 92
        %v654 = vpop.permute.xlu0 %653
        %655 = vrot.lane.b32.xlu0 %v650, 92
        %v656 = vpop.permute.xlu0 %655
        %657 = vrot.lane.b32.xlu0 %v651, 92
        %v658 = vpop.permute.xlu0 %657
        %659 = vrot.lane.b32.xlu0 %v652, 92
        %v660 = vpop.permute.xlu0 %659
        %vm661 = vcmask 752640
        %v662 = vsel %vm661, %v654, %v656
        %v663 = vsel %vm661, %v656, %v658
        %v664 = vsel %vm661, %v658, %v660
        %v668 = vmul.f32 %v645, %v662
        %v669 = vmul.f32 %v645, %v663
        %v670 = vmul.f32 %v645, %v664
        %v671 = vadd.f32 %v639, %v668
        %v672 = vadd.f32 %v640, %v669
        %v673 = vadd.f32 %v641, %v670
        %v674 = vld [vmem:[%s401] sm:$0xff]
        %675 = vset.pattern.permute.xlu0 7
        %676 = vperm.xlu0 %675, %v461
        %v677 = vpop.permute.xlu0 %676
        %680 = vst [vmem:[#allocation1] ss:$4 sm:$0xff] %v674
        %v681 = vld.sshfl [vmem:[#allocation1] sm:$0xff pattern:$0x73625140]
        %v682 = vld.sshfl [vmem:[#allocation1 + $0x8] sm:$0xff pattern:$0x73625140]
        %v683 = vld.sshfl [vmem:[#allocation1 + $0x10] sm:$0xff pattern:$0x73625140]
        %v684 = vld.sshfl [vmem:[#allocation1 + $0x18] sm:$0xff pattern:$0x73625140]
        %685 = vrot.lane.b32.xlu0 %v681, 91
        %v686 = vpop.permute.xlu0 %685
        %687 = vrot.lane.b32.xlu0 %v682, 91
        %v688 = vpop.permute.xlu0 %687
        %689 = vrot.lane.b32.xlu0 %v683, 91
        %v690 = vpop.permute.xlu0 %689
        %691 = vrot.lane.b32.xlu0 %v684, 91
        %v692 = vpop.permute.xlu0 %691
        %vm693 = vcmask 744448
        %v694 = vsel %vm693, %v686, %v688
        %v695 = vsel %vm693, %v688, %v690
        %v696 = vsel %vm693, %v690, %v692
        %v700 = vmul.f32 %v677, %v694
        %v701 = vmul.f32 %v677, %v695
        %v702 = vmul.f32 %v677, %v696
        %v703 = vadd.f32 %v671, %v700
        %v704 = vadd.f32 %v672, %v701
        %v705 = vadd.f32 %v673, %v702
        %v706 = vld [vmem:[%s401] sm:$0xff]
        %707 = vset.pattern.permute.xlu0 8
        %708 = vperm.xlu0 %707, %v461
        %v709 = vpop.permute.xlu0 %708
        %712 = vst [vmem:[#allocation1] ss:$4 sm:$0xff] %v706
        %v713 = vld.sshfl [vmem:[#allocation1] sm:$0xff pattern:$0x73625140]
        %v714 = vld.sshfl [vmem:[#allocation1 + $0x8] sm:$0xff pattern:$0x73625140]
        %v715 = vld.sshfl [vmem:[#allocation1 + $0x10] sm:$0xff pattern:$0x73625140]
        %v716 = vld.sshfl [vmem:[#allocation1 + $0x18] sm:$0xff pattern:$0x73625140]
        %717 = vrot.lane.b32.xlu0 %v713, 90
        %v718 = vpop.permute.xlu0 %717
        %719 = vrot.lane.b32.xlu0 %v714, 90
        %v720 = vpop.permute.xlu0 %719
        %721 = vrot.lane.b32.xlu0 %v715, 90
        %v722 = vpop.permute.xlu0 %721
        %723 = vrot.lane.b32.xlu0 %v716, 90
        %v724 = vpop.permute.xlu0 %723
        %vm725 = vcmask 736256
        %v726 = vsel %vm725, %v718, %v720
        %v727 = vsel %vm725, %v720, %v722
        %v728 = vsel %vm725, %v722, %v724
        %v732 = vmul.f32 %v709, %v726
        %v733 = vmul.f32 %v709, %v727
        %v734 = vmul.f32 %v709, %v728
        %v735 = vadd.f32 %v703, %v732
        %v736 = vadd.f32 %v704, %v733
        %v737 = vadd.f32 %v705, %v734
        %v738 = vld [vmem:[%s354] sm:$0x3f]
        %v739 = vld [vmem:[%s354] sm:$0xff]
        %741 = vst [vmem:[#allocation1] ss:$4 sm:$0xff] %v739
        %v742 = vld.sshfl [vmem:[#allocation1] sm:$0xff pattern:$0x73625140]
        %v743 = vld.sshfl [vmem:[#allocation1 + $0x8] sm:$0xff pattern:$0x73625140]
        %v744 = vld.sshfl [vmem:[#allocation1 + $0x10] sm:$0xff pattern:$0x73625140]
        %v745 = vld.sshfl [vmem:[#allocation1 + $0x18] sm:$0xff pattern:$0x73625140]
        %746 = vrot.lane.b32.xlu0 %v742, 127
        %v747 = vpop.permute.xlu0 %746
        %748 = vrot.lane.b32.xlu0 %v743, 127
        %v749 = vpop.permute.xlu0 %748
        %750 = vrot.lane.b32.xlu0 %v744, 127
        %v751 = vpop.permute.xlu0 %750
        %752 = vrot.lane.b32.xlu0 %v745, 127
        %v753 = vpop.permute.xlu0 %752
        %v754 = vsel %vm501, %v747, %v749
        %v755 = vsel %vm501, %v749, %v751
        %v756 = vsel %vm501, %v751, %v753
        %vm757 = vcmask 15360
        %v759 = vsel %vm757, %v407, 0
        %v761 = vsel %vm429, %v754, 0
        %v763 = vsel %vm429, %v755, 0
        %v765 = vsel %vm429, %v756, 0
        %767 = vmatpush.msra.mxu0 0.0
        %768 = vmatpush.msra.mxu0 0.0
        %769 = vmatpush.msra.mxu0 0.0
        %770 = vmatpush.msra.mxu0 0.0
        %771 = vmatpush.msra.mxu0 0.0
        %772 = vmatpush.msra.mxu0 0.0
        %773 = vmatpush.msra.mxu0 0.0
        %774 = vmatpush.msra.mxu0 0.0
        %775 = vmatpush.msra.mxu0 0.0
        %776 = vmatpush.msra.mxu0 0.0
        %777 = vmatpush.msra.mxu0 0.0
        %778 = vmatpush.msra.mxu0 0.0
        %779 = vmatpush.msra.mxu0 0.0
        %780 = vmatpush.msra.mxu0 0.0
        %781 = vmatpush.msra.mxu0 0.0
        %782 = vmatpush.msra.mxu0 %v761
        %783 = vmatmul.f32.gmra.mxu0 %v759
        %v784 = vpop.f32.mrf.mxu0
        %v785 = vadd.f32 0.0, %v784
        %786 = vdwg.mxu0
        %787 = vmatpush.msra.mxu0 0.0
        %788 = vmatpush.msra.mxu0 0.0
        %789 = vmatpush.msra.mxu0 0.0
        %790 = vmatpush.msra.mxu0 0.0
        %791 = vmatpush.msra.mxu0 0.0
        %792 = vmatpush.msra.mxu0 0.0
        %793 = vmatpush.msra.mxu0 0.0
        %794 = vmatpush.msra.mxu0 0.0
        %795 = vmatpush.msra.mxu0 0.0
        %796 = vmatpush.msra.mxu0 0.0
        %797 = vmatpush.msra.mxu0 0.0
        %798 = vmatpush.msra.mxu0 0.0
        %799 = vmatpush.msra.mxu0 0.0
        %800 = vmatpush.msra.mxu0 0.0
        %801 = vmatpush.msra.mxu0 0.0
        %802 = vmatpush.msra.mxu0 %v763
        %803 = vmatmul.f32.gmra.mxu0 %v759
        %v804 = vpop.f32.mrf.mxu0
        %v805 = vadd.f32 0.0, %v804
        %806 = vdwg.mxu0
        %807 = vmatpush.msra.mxu0 0.0
        %808 = vmatpush.msra.mxu0 0.0
        %809 = vmatpush.msra.mxu0 0.0
        %810 = vmatpush.msra.mxu0 0.0
        %811 = vmatpush.msra.mxu0 0.0
        %812 = vmatpush.msra.mxu0 0.0
        %813 = vmatpush.msra.mxu0 0.0
        %814 = vmatpush.msra.mxu0 0.0
        %815 = vmatpush.msra.mxu0 0.0
        %816 = vmatpush.msra.mxu0 0.0
        %817 = vmatpush.msra.mxu0 0.0
        %818 = vmatpush.msra.mxu0 0.0
        %819 = vmatpush.msra.mxu0 0.0
        %820 = vmatpush.msra.mxu0 0.0
        %821 = vmatpush.msra.mxu0 0.0
        %822 = vmatpush.msra.mxu0 %v765
        %823 = vmatmul.f32.gmra.mxu0 %v759
        %v824 = vpop.f32.mrf.mxu0
        %v825 = vadd.f32 0.0, %v824
        %826 = vdwg.mxu0
        %828 = vst [vmem:[#allocation1] ss:$4 sm:$0xff] %v738
        %v829 = vld.sshfl [vmem:[#allocation1] sm:$0xff pattern:$0x73625140]
        %v830 = vld.sshfl [vmem:[#allocation1 + $0x8] sm:$0xff pattern:$0x73625140]
        %v831 = vld.sshfl [vmem:[#allocation1 + $0x10] sm:$0xff pattern:$0x73625140]
        %v833 = vsel %vm757, %v406, 0
        %v835 = vsel %vm429, %v829, 0
        %v837 = vsel %vm429, %v830, 0
        %v839 = vsel %vm429, %v831, 0
        %841 = vmatpush.msra.mxu0 0.0
        %842 = vmatpush.msra.mxu0 0.0
        %843 = vmatpush.msra.mxu0 0.0
        %844 = vmatpush.msra.mxu0 0.0
        %845 = vmatpush.msra.mxu0 0.0
        %846 = vmatpush.msra.mxu0 0.0
        %847 = vmatpush.msra.mxu0 0.0
        %848 = vmatpush.msra.mxu0 0.0
        %849 = vmatpush.msra.mxu0 0.0
        %850 = vmatpush.msra.mxu0 0.0
        %851 = vmatpush.msra.mxu0 0.0
        %852 = vmatpush.msra.mxu0 0.0
        %853 = vmatpush.msra.mxu0 0.0
        %854 = vmatpush.msra.mxu0 0.0
        %855 = vmatpush.msra.mxu0 0.0
        %856 = vmatpush.msra.mxu0 %v835
        %857 = vmatmul.f32.gmra.mxu0 %v833
        %v858 = vpop.f32.mrf.mxu0
        %v859 = vadd.f32 %v785, %v858
        %860 = vdwg.mxu0
        %861 = vmatpush.msra.mxu0 0.0
        %862 = vmatpush.msra.mxu0 0.0
        %863 = vmatpush.msra.mxu0 0.0
        %864 = vmatpush.msra.mxu0 0.0
        %865 = vmatpush.msra.mxu0 0.0
        %866 = vmatpush.msra.mxu0 0.0
        %867 = vmatpush.msra.mxu0 0.0
        %868 = vmatpush.msra.mxu0 0.0
        %869 = vmatpush.msra.mxu0 0.0
        %870 = vmatpush.msra.mxu0 0.0
        %871 = vmatpush.msra.mxu0 0.0
        %872 = vmatpush.msra.mxu0 0.0
        %873 = vmatpush.msra.mxu0 0.0
        %874 = vmatpush.msra.mxu0 0.0
        %875 = vmatpush.msra.mxu0 0.0
        %876 = vmatpush.msra.mxu0 %v837
        %877 = vmatmul.f32.gmra.mxu0 %v833
        %v878 = vpop.f32.mrf.mxu0
        %v879 = vadd.f32 %v805, %v878
        %880 = vdwg.mxu0
        %881 = vmatpush.msra.mxu0 0.0
        %882 = vmatpush.msra.mxu0 0.0
        %883 = vmatpush.msra.mxu0 0.0
        %884 = vmatpush.msra.mxu0 0.0
        %885 = vmatpush.msra.mxu0 0.0
        %886 = vmatpush.msra.mxu0 0.0
        %887 = vmatpush.msra.mxu0 0.0
        %888 = vmatpush.msra.mxu0 0.0
        %889 = vmatpush.msra.mxu0 0.0
        %890 = vmatpush.msra.mxu0 0.0
        %891 = vmatpush.msra.mxu0 0.0
        %892 = vmatpush.msra.mxu0 0.0
        %893 = vmatpush.msra.mxu0 0.0
        %894 = vmatpush.msra.mxu0 0.0
        %895 = vmatpush.msra.mxu0 0.0
        %896 = vmatpush.msra.mxu0 %v839
        %897 = vmatmul.f32.gmra.mxu0 %v833
        %v898 = vpop.f32.mrf.mxu0
        %v899 = vadd.f32 %v825, %v898
        %900 = vdwg.mxu0
        %v901 = vld [vmem:[%s354] sm:$0xff]
        %903 = vst [vmem:[#allocation1] ss:$4 sm:$0xff] %v901
        %v904 = vld.sshfl [vmem:[#allocation1] sm:$0xff pattern:$0x73625140]
        %v905 = vld.sshfl [vmem:[#allocation1 + $0x8] sm:$0xff pattern:$0x73625140]
        %v906 = vld.sshfl [vmem:[#allocation1 + $0x10] sm:$0xff pattern:$0x73625140]
        %v907 = vld.sshfl [vmem:[#allocation1 + $0x18] sm:$0xff pattern:$0x73625140]
        %908 = vrot.lane.b32.xlu0 %v904, 126
        %v909 = vpop.permute.xlu0 %908
        %910 = vrot.lane.b32.xlu0 %v905, 126
        %v911 = vpop.permute.xlu0 %910
        %912 = vrot.lane.b32.xlu0 %v906, 126
        %v913 = vpop.permute.xlu0 %912
        %914 = vrot.lane.b32.xlu0 %v907, 126
        %v915 = vpop.permute.xlu0 %914
        %v916 = vsel %vm533, %v909, %v911
        %v917 = vsel %vm533, %v911, %v913
        %v918 = vsel %vm533, %v913, %v915
        %v920 = vsel %vm757, %v408, 0
        %v922 = vsel %vm429, %v916, 0
        %v924 = vsel %vm429, %v917, 0
        %v926 = vsel %vm429, %v918, 0
        %928 = vmatpush.msra.mxu0 0.0
        %929 = vmatpush.msra.mxu0 0.0
        %930 = vmatpush.msra.mxu0 0.0
        %931 = vmatpush.msra.mxu0 0.0
        %932 = vmatpush.msra.mxu0 0.0
        %933 = vmatpush.msra.mxu0 0.0
        %934 = vmatpush.msra.mxu0 0.0
        %935 = vmatpush.msra.mxu0 0.0
        %936 = vmatpush.msra.mxu0 0.0
        %937 = vmatpush.msra.mxu0 0.0
        %938 = vmatpush.msra.mxu0 0.0
        %939 = vmatpush.msra.mxu0 0.0
        %940 = vmatpush.msra.mxu0 0.0
        %941 = vmatpush.msra.mxu0 0.0
        %942 = vmatpush.msra.mxu0 0.0
        %943 = vmatpush.msra.mxu0 %v922
        %944 = vmatmul.f32.gmra.mxu0 %v920
        %v945 = vpop.f32.mrf.mxu0
        %v946 = vadd.f32 0.0, %v945
        %947 = vdwg.mxu0
        %948 = vmatpush.msra.mxu0 0.0
        %949 = vmatpush.msra.mxu0 0.0
        %950 = vmatpush.msra.mxu0 0.0
        %951 = vmatpush.msra.mxu0 0.0
        %952 = vmatpush.msra.mxu0 0.0
        %953 = vmatpush.msra.mxu0 0.0
        %954 = vmatpush.msra.mxu0 0.0
        %955 = vmatpush.msra.mxu0 0.0
        %956 = vmatpush.msra.mxu0 0.0
        %957 = vmatpush.msra.mxu0 0.0
        %958 = vmatpush.msra.mxu0 0.0
        %959 = vmatpush.msra.mxu0 0.0
        %960 = vmatpush.msra.mxu0 0.0
        %961 = vmatpush.msra.mxu0 0.0
        %962 = vmatpush.msra.mxu0 0.0
        %963 = vmatpush.msra.mxu0 %v924
        %964 = vmatmul.f32.gmra.mxu0 %v920
        %v965 = vpop.f32.mrf.mxu0
        %v966 = vadd.f32 0.0, %v965
        %967 = vdwg.mxu0
        %968 = vmatpush.msra.mxu0 0.0
        %969 = vmatpush.msra.mxu0 0.0
        %970 = vmatpush.msra.mxu0 0.0
        %971 = vmatpush.msra.mxu0 0.0
        %972 = vmatpush.msra.mxu0 0.0
        %973 = vmatpush.msra.mxu0 0.0
        %974 = vmatpush.msra.mxu0 0.0
        %975 = vmatpush.msra.mxu0 0.0
        %976 = vmatpush.msra.mxu0 0.0
        %977 = vmatpush.msra.mxu0 0.0
        %978 = vmatpush.msra.mxu0 0.0
        %979 = vmatpush.msra.mxu0 0.0
        %980 = vmatpush.msra.mxu0 0.0
        %981 = vmatpush.msra.mxu0 0.0
        %982 = vmatpush.msra.mxu0 0.0
        %983 = vmatpush.msra.mxu0 %v926
        %984 = vmatmul.f32.gmra.mxu0 %v920
        %v985 = vpop.f32.mrf.mxu0
        %v986 = vadd.f32 0.0, %v985
        %987 = vdwg.mxu0
        %v988 = vadd.f32 %v859, %v946
        %v989 = vadd.f32 %v879, %v966
        %v990 = vadd.f32 %v899, %v986
        %v991 = vld [vmem:[%s354] sm:$0xff]
        %993 = vst [vmem:[#allocation1] ss:$4 sm:$0xff] %v991
        %v994 = vld.sshfl [vmem:[#allocation1] sm:$0xff pattern:$0x73625140]
        %v995 = vld.sshfl [vmem:[#allocation1 + $0x8] sm:$0xff pattern:$0x73625140]
        %v996 = vld.sshfl [vmem:[#allocation1 + $0x10] sm:$0xff pattern:$0x73625140]
        %v997 = vld.sshfl [vmem:[#allocation1 + $0x18] sm:$0xff pattern:$0x73625140]
        %998 = vrot.lane.b32.xlu0 %v994, 110
        %v999 = vpop.permute.xlu0 %998
        %1000 = vrot.lane.b32.xlu0 %v995, 110
        %v1001 = vpop.permute.xlu0 %1000
        %1002 = vrot.lane.b32.xlu0 %v996, 110
        %v1003 = vpop.permute.xlu0 %1002
        %1004 = vrot.lane.b32.xlu0 %v997, 110
        %v1005 = vpop.permute.xlu0 %1004
        %v1006 = vsel %vm565, %v999, %v1001
        %v1007 = vsel %vm565, %v1001, %v1003
        %v1008 = vsel %vm565, %v1003, %v1005
        %v1010 = vsel %vm757, %v409, 0
        %v1012 = vsel %vm429, %v1006, 0
        %v1014 = vsel %vm429, %v1007, 0
        %v1016 = vsel %vm429, %v1008, 0
        %1018 = vmatpush.msra.mxu0 0.0
        %1019 = vmatpush.msra.mxu0 0.0
        %1020 = vmatpush.msra.mxu0 0.0
        %1021 = vmatpush.msra.mxu0 0.0
        %1022 = vmatpush.msra.mxu0 0.0
        %1023 = vmatpush.msra.mxu0 0.0
        %1024 = vmatpush.msra.mxu0 0.0
        %1025 = vmatpush.msra.mxu0 0.0
        %1026 = vmatpush.msra.mxu0 0.0
        %1027 = vmatpush.msra.mxu0 0.0
        %1028 = vmatpush.msra.mxu0 0.0
        %1029 = vmatpush.msra.mxu0 0.0
        %1030 = vmatpush.msra.mxu0 0.0
        %1031 = vmatpush.msra.mxu0 0.0
        %1032 = vmatpush.msra.mxu0 0.0
        %1033 = vmatpush.msra.mxu0 %v1012
        %1034 = vmatmul.f32.gmra.mxu0 %v1010
        %v1035 = vpop.f32.mrf.mxu0
        %v1036 = vadd.f32 0.0, %v1035
        %1037 = vdwg.mxu0
        %1038 = vmatpush.msra.mxu0 0.0
        %1039 = vmatpush.msra.mxu0 0.0
        %1040 = vmatpush.msra.mxu0 0.0
        %1041 = vmatpush.msra.mxu0 0.0
        %1042 = vmatpush.msra.mxu0 0.0
        %1043 = vmatpush.msra.mxu0 0.0
        %1044 = vmatpush.msra.mxu0 0.0
        %1045 = vmatpush.msra.mxu0 0.0
        %1046 = vmatpush.msra.mxu0 0.0
        %1047 = vmatpush.msra.mxu0 0.0
        %1048 = vmatpush.msra.mxu0 0.0
        %1049 = vmatpush.msra.mxu0 0.0
        %1050 = vmatpush.msra.mxu0 0.0
        %1051 = vmatpush.msra.mxu0 0.0
        %1052 = vmatpush.msra.mxu0 0.0
        %1053 = vmatpush.msra.mxu0 %v1014
        %1054 = vmatmul.f32.gmra.mxu0 %v1010
        %v1055 = vpop.f32.mrf.mxu0
        %v1056 = vadd.f32 0.0, %v1055
        %1057 = vdwg.mxu0
        %1058 = vmatpush.msra.mxu0 0.0
        %1059 = vmatpush.msra.mxu0 0.0
        %1060 = vmatpush.msra.mxu0 0.0
        %1061 = vmatpush.msra.mxu0 0.0
        %1062 = vmatpush.msra.mxu0 0.0
        %1063 = vmatpush.msra.mxu0 0.0
        %1064 = vmatpush.msra.mxu0 0.0
        %1065 = vmatpush.msra.mxu0 0.0
        %1066 = vmatpush.msra.mxu0 0.0
        %1067 = vmatpush.msra.mxu0 0.0
        %1068 = vmatpush.msra.mxu0 0.0
        %1069 = vmatpush.msra.mxu0 0.0
        %1070 = vmatpush.msra.mxu0 0.0
        %1071 = vmatpush.msra.mxu0 0.0
        %1072 = vmatpush.msra.mxu0 0.0
        %1073 = vmatpush.msra.mxu0 %v1016
        %1074 = vmatmul.f32.gmra.mxu0 %v1010
        %v1075 = vpop.f32.mrf.mxu0
        %v1076 = vadd.f32 0.0, %v1075
        %1077 = vdwg.mxu0
        %v1078 = vadd.f32 %v988, %v1036
        %v1079 = vadd.f32 %v989, %v1056
        %v1080 = vadd.f32 %v990, %v1076
        %v1081 = vld [vmem:[%s354] sm:$0xff]
        %1083 = vst [vmem:[#allocation1] ss:$4 sm:$0xff] %v1081
        %v1084 = vld.sshfl [vmem:[#allocation1] sm:$0xff pattern:$0x73625140]
        %v1085 = vld.sshfl [vmem:[#allocation1 + $0x8] sm:$0xff pattern:$0x73625140]
        %v1086 = vld.sshfl [vmem:[#allocation1 + $0x10] sm:$0xff pattern:$0x73625140]
        %v1087 = vld.sshfl [vmem:[#allocation1 + $0x18] sm:$0xff pattern:$0x73625140]
        %1088 = vrot.lane.b32.xlu0 %v1084, 109
        %v1089 = vpop.permute.xlu0 %1088
        %1090 = vrot.lane.b32.xlu0 %v1085, 109
        %v1091 = vpop.permute.xlu0 %1090
        %1092 = vrot.lane.b32.xlu0 %v1086, 109
        %v1093 = vpop.permute.xlu0 %1092
        %1094 = vrot.lane.b32.xlu0 %v1087, 109
        %v1095 = vpop.permute.xlu0 %1094
        %v1096 = vsel %vm597, %v1089, %v1091
        %v1097 = vsel %vm597, %v1091, %v1093
        %v1098 = vsel %vm597, %v1093, %v1095
        %v1100 = vsel %vm757, %v410, 0
        %v1102 = vsel %vm429, %v1096, 0
        %v1104 = vsel %vm429, %v1097, 0
        %v1106 = vsel %vm429, %v1098, 0
        %1108 = vmatpush.msra.mxu0 0.0
        %1109 = vmatpush.msra.mxu0 0.0
        %1110 = vmatpush.msra.mxu0 0.0
        %1111 = vmatpush.msra.mxu0 0.0
        %1112 = vmatpush.msra.mxu0 0.0
        %1113 = vmatpush.msra.mxu0 0.0
        %1114 = vmatpush.msra.mxu0 0.0
        %1115 = vmatpush.msra.mxu0 0.0
        %1116 = vmatpush.msra.mxu0 0.0
        %1117 = vmatpush.msra.mxu0 0.0
        %1118 = vmatpush.msra.mxu0 0.0
        %1119 = vmatpush.msra.mxu0 0.0
        %1120 = vmatpush.msra.mxu0 0.0
        %1121 = vmatpush.msra.mxu0 0.0
        %1122 = vmatpush.msra.mxu0 0.0
        %1123 = vmatpush.msra.mxu0 %v1102
        %1124 = vmatmul.f32.gmra.mxu0 %v1100
        %v1125 = vpop.f32.mrf.mxu0
        %v1126 = vadd.f32 0.0, %v1125
        %1127 = vdwg.mxu0
        %1128 = vmatpush.msra.mxu0 0.0
        %1129 = vmatpush.msra.mxu0 0.0
        %1130 = vmatpush.msra.mxu0 0.0
        %1131 = vmatpush.msra.mxu0 0.0
        %1132 = vmatpush.msra.mxu0 0.0
        %1133 = vmatpush.msra.mxu0 0.0
        %1134 = vmatpush.msra.mxu0 0.0
        %1135 = vmatpush.msra.mxu0 0.0
        %1136 = vmatpush.msra.mxu0 0.0
        %1137 = vmatpush.msra.mxu0 0.0
        %1138 = vmatpush.msra.mxu0 0.0
        %1139 = vmatpush.msra.mxu0 0.0
        %1140 = vmatpush.msra.mxu0 0.0
        %1141 = vmatpush.msra.mxu0 0.0
        %1142 = vmatpush.msra.mxu0 0.0
        %1143 = vmatpush.msra.mxu0 %v1104
        %1144 = vmatmul.f32.gmra.mxu0 %v1100
        %v1145 = vpop.f32.mrf.mxu0
        %v1146 = vadd.f32 0.0, %v1145
        %1147 = vdwg.mxu0
        %1148 = vmatpush.msra.mxu0 0.0
        %1149 = vmatpush.msra.mxu0 0.0
        %1150 = vmatpush.msra.mxu0 0.0
        %1151 = vmatpush.msra.mxu0 0.0
        %1152 = vmatpush.msra.mxu0 0.0
        %1153 = vmatpush.msra.mxu0 0.0
        %1154 = vmatpush.msra.mxu0 0.0
        %1155 = vmatpush.msra.mxu0 0.0
        %1156 = vmatpush.msra.mxu0 0.0
        %1157 = vmatpush.msra.mxu0 0.0
        %1158 = vmatpush.msra.mxu0 0.0
        %1159 = vmatpush.msra.mxu0 0.0
        %1160 = vmatpush.msra.mxu0 0.0
        %1161 = vmatpush.msra.mxu0 0.0
        %1162 = vmatpush.msra.mxu0 0.0
        %1163 = vmatpush.msra.mxu0 %v1106
        %1164 = vmatmul.f32.gmra.mxu0 %v1100
        %v1165 = vpop.f32.mrf.mxu0
        %v1166 = vadd.f32 0.0, %v1165
        %1167 = vdwg.mxu0
        %v1168 = vadd.f32 %v1078, %v1126
        %v1169 = vadd.f32 %v1079, %v1146
        %v1170 = vadd.f32 %v1080, %v1166
        %v1171 = vld [vmem:[%s354] sm:$0xff]
        %1173 = vst [vmem:[#allocation1] ss:$4 sm:$0xff] %v1171
        %v1174 = vld.sshfl [vmem:[#allocation1] sm:$0xff pattern:$0x73625140]
        %v1175 = vld.sshfl [vmem:[#allocation1 + $0x8] sm:$0xff pattern:$0x73625140]
        %v1176 = vld.sshfl [vmem:[#allocation1 + $0x10] sm:$0xff pattern:$0x73625140]
        %v1177 = vld.sshfl [vmem:[#allocation1 + $0x18] sm:$0xff pattern:$0x73625140]
        %1178 = vrot.lane.b32.xlu0 %v1174, 108
        %v1179 = vpop.permute.xlu0 %1178
        %1180 = vrot.lane.b32.xlu0 %v1175, 108
        %v1181 = vpop.permute.xlu0 %1180
        %1182 = vrot.lane.b32.xlu0 %v1176, 108
        %v1183 = vpop.permute.xlu0 %1182
        %1184 = vrot.lane.b32.xlu0 %v1177, 108
        %v1185 = vpop.permute.xlu0 %1184
        %v1186 = vsel %vm629, %v1179, %v1181
        %v1187 = vsel %vm629, %v1181, %v1183
        %v1188 = vsel %vm629, %v1183, %v1185
        %v1190 = vsel %vm757, %v411, 0
        %v1192 = vsel %vm429, %v1186, 0
        %v1194 = vsel %vm429, %v1187, 0
        %v1196 = vsel %vm429, %v1188, 0
        %1198 = vmatpush.msra.mxu0 0.0
        %1199 = vmatpush.msra.mxu0 0.0
        %1200 = vmatpush.msra.mxu0 0.0
        %1201 = vmatpush.msra.mxu0 0.0
        %1202 = vmatpush.msra.mxu0 0.0
        %1203 = vmatpush.msra.mxu0 0.0
        %1204 = vmatpush.msra.mxu0 0.0
        %1205 = vmatpush.msra.mxu0 0.0
        %1206 = vmatpush.msra.mxu0 0.0
        %1207 = vmatpush.msra.mxu0 0.0
        %1208 = vmatpush.msra.mxu0 0.0
        %1209 = vmatpush.msra.mxu0 0.0
        %1210 = vmatpush.msra.mxu0 0.0
        %1211 = vmatpush.msra.mxu0 0.0
        %1212 = vmatpush.msra.mxu0 0.0
        %1213 = vmatpush.msra.mxu0 %v1192
        %1214 = vmatmul.f32.gmra.mxu0 %v1190
        %v1215 = vpop.f32.mrf.mxu0
        %v1216 = vadd.f32 0.0, %v1215
        %1217 = vdwg.mxu0
        %1218 = vmatpush.msra.mxu0 0.0
        %1219 = vmatpush.msra.mxu0 0.0
        %1220 = vmatpush.msra.mxu0 0.0
        %1221 = vmatpush.msra.mxu0 0.0
        %1222 = vmatpush.msra.mxu0 0.0
        %1223 = vmatpush.msra.mxu0 0.0
        %1224 = vmatpush.msra.mxu0 0.0
        %1225 = vmatpush.msra.mxu0 0.0
        %1226 = vmatpush.msra.mxu0 0.0
        %1227 = vmatpush.msra.mxu0 0.0
        %1228 = vmatpush.msra.mxu0 0.0
        %1229 = vmatpush.msra.mxu0 0.0
        %1230 = vmatpush.msra.mxu0 0.0
        %1231 = vmatpush.msra.mxu0 0.0
        %1232 = vmatpush.msra.mxu0 0.0
        %1233 = vmatpush.msra.mxu0 %v1194
        %1234 = vmatmul.f32.gmra.mxu0 %v1190
        %v1235 = vpop.f32.mrf.mxu0
        %v1236 = vadd.f32 0.0, %v1235
        %1237 = vdwg.mxu0
        %1238 = vmatpush.msra.mxu0 0.0
        %1239 = vmatpush.msra.mxu0 0.0
        %1240 = vmatpush.msra.mxu0 0.0
        %1241 = vmatpush.msra.mxu0 0.0
        %1242 = vmatpush.msra.mxu0 0.0
        %1243 = vmatpush.msra.mxu0 0.0
        %1244 = vmatpush.msra.mxu0 0.0
        %1245 = vmatpush.msra.mxu0 0.0
        %1246 = vmatpush.msra.mxu0 0.0
        %1247 = vmatpush.msra.mxu0 0.0
        %1248 = vmatpush.msra.mxu0 0.0
        %1249 = vmatpush.msra.mxu0 0.0
        %1250 = vmatpush.msra.mxu0 0.0
        %1251 = vmatpush.msra.mxu0 0.0
        %1252 = vmatpush.msra.mxu0 0.0
        %1253 = vmatpush.msra.mxu0 %v1196
        %1254 = vmatmul.f32.gmra.mxu0 %v1190
        %v1255 = vpop.f32.mrf.mxu0
        %v1256 = vadd.f32 0.0, %v1255
        %1257 = vdwg.mxu0
        %v1258 = vadd.f32 %v1168, %v1216
        %v1259 = vadd.f32 %v1169, %v1236
        %v1260 = vadd.f32 %v1170, %v1256
        %v1261 = vld [vmem:[%s354] sm:$0xff]
        %1263 = vst [vmem:[#allocation1] ss:$4 sm:$0xff] %v1261
        %v1264 = vld.sshfl [vmem:[#allocation1] sm:$0xff pattern:$0x73625140]
        %v1265 = vld.sshfl [vmem:[#allocation1 + $0x8] sm:$0xff pattern:$0x73625140]
        %v1266 = vld.sshfl [vmem:[#allocation1 + $0x10] sm:$0xff pattern:$0x73625140]
        %v1267 = vld.sshfl [vmem:[#allocation1 + $0x18] sm:$0xff pattern:$0x73625140]
        %1268 = vrot.lane.b32.xlu0 %v1264, 92
        %v1269 = vpop.permute.xlu0 %1268
        %1270 = vrot.lane.b32.xlu0 %v1265, 92
        %v1271 = vpop.permute.xlu0 %1270
        %1272 = vrot.lane.b32.xlu0 %v1266, 92
        %v1273 = vpop.permute.xlu0 %1272
        %1274 = vrot.lane.b32.xlu0 %v1267, 92
        %v1275 = vpop.permute.xlu0 %1274
        %v1276 = vsel %vm661, %v1269, %v1271
        %v1277 = vsel %vm661, %v1271, %v1273
        %v1278 = vsel %vm661, %v1273, %v1275
        %v1280 = vsel %vm757, %v412, 0
        %v1282 = vsel %vm429, %v1276, 0
        %v1284 = vsel %vm429, %v1277, 0
        %v1286 = vsel %vm429, %v1278, 0
        %1288 = vmatpush.msra.mxu0 0.0
        %1289 = vmatpush.msra.mxu0 0.0
        %1290 = vmatpush.msra.mxu0 0.0
        %1291 = vmatpush.msra.mxu0 0.0
        %1292 = vmatpush.msra.mxu0 0.0
        %1293 = vmatpush.msra.mxu0 0.0
        %1294 = vmatpush.msra.mxu0 0.0
        %1295 = vmatpush.msra.mxu0 0.0
        %1296 = vmatpush.msra.mxu0 0.0
        %1297 = vmatpush.msra.mxu0 0.0
        %1298 = vmatpush.msra.mxu0 0.0
        %1299 = vmatpush.msra.mxu0 0.0
        %1300 = vmatpush.msra.mxu0 0.0
        %1301 = vmatpush.msra.mxu0 0.0
        %1302 = vmatpush.msra.mxu0 0.0
        %1303 = vmatpush.msra.mxu0 %v1282
        %1304 = vmatmul.f32.gmra.mxu0 %v1280
        %v1305 = vpop.f32.mrf.mxu0
        %v1306 = vadd.f32 0.0, %v1305
        %1307 = vdwg.mxu0
        %1308 = vmatpush.msra.mxu0 0.0
        %1309 = vmatpush.msra.mxu0 0.0
        %1310 = vmatpush.msra.mxu0 0.0
        %1311 = vmatpush.msra.mxu0 0.0
        %1312 = vmatpush.msra.mxu0 0.0
        %1313 = vmatpush.msra.mxu0 0.0
        %1314 = vmatpush.msra.mxu0 0.0
        %1315 = vmatpush.msra.mxu0 0.0
        %1316 = vmatpush.msra.mxu0 0.0
        %1317 = vmatpush.msra.mxu0 0.0
        %1318 = vmatpush.msra.mxu0 0.0
        %1319 = vmatpush.msra.mxu0 0.0
        %1320 = vmatpush.msra.mxu0 0.0
        %1321 = vmatpush.msra.mxu0 0.0
        %1322 = vmatpush.msra.mxu0 0.0
        %1323 = vmatpush.msra.mxu0 %v1284
        %1324 = vmatmul.f32.gmra.mxu0 %v1280
        %v1325 = vpop.f32.mrf.mxu0
        %v1326 = vadd.f32 0.0, %v1325
        %1327 = vdwg.mxu0
        %1328 = vmatpush.msra.mxu0 0.0
        %1329 = vmatpush.msra.mxu0 0.0
        %1330 = vmatpush.msra.mxu0 0.0
        %1331 = vmatpush.msra.mxu0 0.0
        %1332 = vmatpush.msra.mxu0 0.0
        %1333 = vmatpush.msra.mxu0 0.0
        %1334 = vmatpush.msra.mxu0 0.0
        %1335 = vmatpush.msra.mxu0 0.0
        %1336 = vmatpush.msra.mxu0 0.0
        %1337 = vmatpush.msra.mxu0 0.0
        %1338 = vmatpush.msra.mxu0 0.0
        %1339 = vmatpush.msra.mxu0 0.0
        %1340 = vmatpush.msra.mxu0 0.0
        %1341 = vmatpush.msra.mxu0 0.0
        %1342 = vmatpush.msra.mxu0 0.0
        %1343 = vmatpush.msra.mxu0 %v1286
        %1344 = vmatmul.f32.gmra.mxu0 %v1280
        %v1345 = vpop.f32.mrf.mxu0
        %v1346 = vadd.f32 0.0, %v1345
        %1347 = vdwg.mxu0
        %v1348 = vadd.f32 %v1258, %v1306
        %v1349 = vadd.f32 %v1259, %v1326
        %v1350 = vadd.f32 %v1260, %v1346
        %v1351 = vld [vmem:[%s354] sm:$0xff]
        %1353 = vst [vmem:[#allocation1] ss:$4 sm:$0xff] %v1351
        %v1354 = vld.sshfl [vmem:[#allocation1] sm:$0xff pattern:$0x73625140]
        %v1355 = vld.sshfl [vmem:[#allocation1 + $0x8] sm:$0xff pattern:$0x73625140]
        %v1356 = vld.sshfl [vmem:[#allocation1 + $0x10] sm:$0xff pattern:$0x73625140]
        %v1357 = vld.sshfl [vmem:[#allocation1 + $0x18] sm:$0xff pattern:$0x73625140]
        %1358 = vrot.lane.b32.xlu0 %v1354, 91
        %v1359 = vpop.permute.xlu0 %1358
        %1360 = vrot.lane.b32.xlu0 %v1355, 91
        %v1361 = vpop.permute.xlu0 %1360
        %1362 = vrot.lane.b32.xlu0 %v1356, 91
        %v1363 = vpop.permute.xlu0 %1362
        %1364 = vrot.lane.b32.xlu0 %v1357, 91
        %v1365 = vpop.permute.xlu0 %1364
        %v1366 = vsel %vm693, %v1359, %v1361
        %v1367 = vsel %vm693, %v1361, %v1363
        %v1368 = vsel %vm693, %v1363, %v1365
        %v1370 = vsel %vm757, %v413, 0
        %v1372 = vsel %vm429, %v1366, 0
        %v1374 = vsel %vm429, %v1367, 0
        %v1376 = vsel %vm429, %v1368, 0
        %1378 = vmatpush.msra.mxu0 0.0
        %1379 = vmatpush.msra.mxu0 0.0
        %1380 = vmatpush.msra.mxu0 0.0
        %1381 = vmatpush.msra.mxu0 0.0
        %1382 = vmatpush.msra.mxu0 0.0
        %1383 = vmatpush.msra.mxu0 0.0
        %1384 = vmatpush.msra.mxu0 0.0
        %1385 = vmatpush.msra.mxu0 0.0
        %1386 = vmatpush.msra.mxu0 0.0
        %1387 = vmatpush.msra.mxu0 0.0
        %1388 = vmatpush.msra.mxu0 0.0
        %1389 = vmatpush.msra.mxu0 0.0
        %1390 = vmatpush.msra.mxu0 0.0
        %1391 = vmatpush.msra.mxu0 0.0
        %1392 = vmatpush.msra.mxu0 0.0
        %1393 = vmatpush.msra.mxu0 %v1372
        %1394 = vmatmul.f32.gmra.mxu0 %v1370
        %v1395 = vpop.f32.mrf.mxu0
        %v1396 = vadd.f32 0.0, %v1395
        %1397 = vdwg.mxu0
        %1398 = vmatpush.msra.mxu0 0.0
        %1399 = vmatpush.msra.mxu0 0.0
        %1400 = vmatpush.msra.mxu0 0.0
        %1401 = vmatpush.msra.mxu0 0.0
        %1402 = vmatpush.msra.mxu0 0.0
        %1403 = vmatpush.msra.mxu0 0.0
        %1404 = vmatpush.msra.mxu0 0.0
        %1405 = vmatpush.msra.mxu0 0.0
        %1406 = vmatpush.msra.mxu0 0.0
        %1407 = vmatpush.msra.mxu0 0.0
        %1408 = vmatpush.msra.mxu0 0.0
        %1409 = vmatpush.msra.mxu0 0.0
        %1410 = vmatpush.msra.mxu0 0.0
        %1411 = vmatpush.msra.mxu0 0.0
        %1412 = vmatpush.msra.mxu0 0.0
        %1413 = vmatpush.msra.mxu0 %v1374
        %1414 = vmatmul.f32.gmra.mxu0 %v1370
        %v1415 = vpop.f32.mrf.mxu0
        %v1416 = vadd.f32 0.0, %v1415
        %1417 = vdwg.mxu0
        %1418 = vmatpush.msra.mxu0 0.0
        %1419 = vmatpush.msra.mxu0 0.0
        %1420 = vmatpush.msra.mxu0 0.0
        %1421 = vmatpush.msra.mxu0 0.0
        %1422 = vmatpush.msra.mxu0 0.0
        %1423 = vmatpush.msra.mxu0 0.0
        %1424 = vmatpush.msra.mxu0 0.0
        %1425 = vmatpush.msra.mxu0 0.0
        %1426 = vmatpush.msra.mxu0 0.0
        %1427 = vmatpush.msra.mxu0 0.0
        %1428 = vmatpush.msra.mxu0 0.0
        %1429 = vmatpush.msra.mxu0 0.0
        %1430 = vmatpush.msra.mxu0 0.0
        %1431 = vmatpush.msra.mxu0 0.0
        %1432 = vmatpush.msra.mxu0 0.0
        %1433 = vmatpush.msra.mxu0 %v1376
        %1434 = vmatmul.f32.gmra.mxu0 %v1370
        %v1435 = vpop.f32.mrf.mxu0
        %v1436 = vadd.f32 0.0, %v1435
        %1437 = vdwg.mxu0
        %v1438 = vadd.f32 %v1348, %v1396
        %v1439 = vadd.f32 %v1349, %v1416
        %v1440 = vadd.f32 %v1350, %v1436
        %v1441 = vld [vmem:[%s354] sm:$0xff]
        %1443 = vst [vmem:[#allocation1] ss:$4 sm:$0xff] %v1441
        %v1444 = vld.sshfl [vmem:[#allocation1] sm:$0xff pattern:$0x73625140]
        %v1445 = vld.sshfl [vmem:[#allocation1 + $0x8] sm:$0xff pattern:$0x73625140]
        %v1446 = vld.sshfl [vmem:[#allocation1 + $0x10] sm:$0xff pattern:$0x73625140]
        %v1447 = vld.sshfl [vmem:[#allocation1 + $0x18] sm:$0xff pattern:$0x73625140]
        %1448 = vrot.lane.b32.xlu0 %v1444, 90
        %v1449 = vpop.permute.xlu0 %1448
        %1450 = vrot.lane.b32.xlu0 %v1445, 90
        %v1451 = vpop.permute.xlu0 %1450
        %1452 = vrot.lane.b32.xlu0 %v1446, 90
        %v1453 = vpop.permute.xlu0 %1452
        %1454 = vrot.lane.b32.xlu0 %v1447, 90
        %v1455 = vpop.permute.xlu0 %1454
        %v1456 = vsel %vm725, %v1449, %v1451
        %v1457 = vsel %vm725, %v1451, %v1453
        %v1458 = vsel %vm725, %v1453, %v1455
        %v1460 = vsel %vm757, %v414, 0
        %v1462 = vsel %vm429, %v1456, 0
        %v1464 = vsel %vm429, %v1457, 0
        %v1466 = vsel %vm429, %v1458, 0
        %1468 = vmatpush.msra.mxu0 0.0
        %1469 = vmatpush.msra.mxu0 0.0
        %1470 = vmatpush.msra.mxu0 0.0
        %1471 = vmatpush.msra.mxu0 0.0
        %1472 = vmatpush.msra.mxu0 0.0
        %1473 = vmatpush.msra.mxu0 0.0
        %1474 = vmatpush.msra.mxu0 0.0
        %1475 = vmatpush.msra.mxu0 0.0
        %1476 = vmatpush.msra.mxu0 0.0
        %1477 = vmatpush.msra.mxu0 0.0
        %1478 = vmatpush.msra.mxu0 0.0
        %1479 = vmatpush.msra.mxu0 0.0
        %1480 = vmatpush.msra.mxu0 0.0
        %1481 = vmatpush.msra.mxu0 0.0
        %1482 = vmatpush.msra.mxu0 0.0
        %1483 = vmatpush.msra.mxu0 %v1462
        %1484 = vmatmul.f32.gmra.mxu0 %v1460
        %v1485 = vpop.f32.mrf.mxu0
        %v1486 = vadd.f32 0.0, %v1485
        %1487 = vdwg.mxu0
        %1488 = vmatpush.msra.mxu0 0.0
        %1489 = vmatpush.msra.mxu0 0.0
        %1490 = vmatpush.msra.mxu0 0.0
        %1491 = vmatpush.msra.mxu0 0.0
        %1492 = vmatpush.msra.mxu0 0.0
        %1493 = vmatpush.msra.mxu0 0.0
        %1494 = vmatpush.msra.mxu0 0.0
        %1495 = vmatpush.msra.mxu0 0.0
        %1496 = vmatpush.msra.mxu0 0.0
        %1497 = vmatpush.msra.mxu0 0.0
        %1498 = vmatpush.msra.mxu0 0.0
        %1499 = vmatpush.msra.mxu0 0.0
        %1500 = vmatpush.msra.mxu0 0.0
        %1501 = vmatpush.msra.mxu0 0.0
        %1502 = vmatpush.msra.mxu0 0.0
        %1503 = vmatpush.msra.mxu0 %v1464
        %1504 = vmatmul.f32.gmra.mxu0 %v1460
        %v1505 = vpop.f32.mrf.mxu0
        %v1506 = vadd.f32 0.0, %v1505
        %1507 = vdwg.mxu0
        %1508 = vmatpush.msra.mxu0 0.0
        %1509 = vmatpush.msra.mxu0 0.0
        %1510 = vmatpush.msra.mxu0 0.0
        %1511 = vmatpush.msra.mxu0 0.0
        %1512 = vmatpush.msra.mxu0 0.0
        %1513 = vmatpush.msra.mxu0 0.0
        %1514 = vmatpush.msra.mxu0 0.0
        %1515 = vmatpush.msra.mxu0 0.0
        %1516 = vmatpush.msra.mxu0 0.0
        %1517 = vmatpush.msra.mxu0 0.0
        %1518 = vmatpush.msra.mxu0 0.0
        %1519 = vmatpush.msra.mxu0 0.0
        %1520 = vmatpush.msra.mxu0 0.0
        %1521 = vmatpush.msra.mxu0 0.0
        %1522 = vmatpush.msra.mxu0 0.0
        %1523 = vmatpush.msra.mxu0 %v1466
        %1524 = vmatmul.f32.gmra.mxu0 %v1460
        %v1525 = vpop.f32.mrf.mxu0
        %v1526 = vadd.f32 0.0, %v1525
        %1527 = vdwg.mxu0
        %v1528 = vadd.f32 %v1438, %v1486
        %v1529 = vadd.f32 %v1439, %v1506
        %v1530 = vadd.f32 %v1440, %v1526
        %v1532 = vsel %vm757, %v416, 0
        %v1535 = vsel %vm429, %v1528, 0
        %v1538 = vsel %vm429, %v1529, 0
        %v1541 = vsel %vm429, %v1530, 0
        %1543 = vmatpush.msra.mxu0 0.0
        %1544 = vmatpush.msra.mxu0 0.0
        %1545 = vmatpush.msra.mxu0 0.0
        %1546 = vmatpush.msra.mxu0 0.0
        %1547 = vmatpush.msra.mxu0 0.0
        %1548 = vmatpush.msra.mxu0 0.0
        %1549 = vmatpush.msra.mxu0 0.0
        %1550 = vmatpush.msra.mxu0 0.0
        %1551 = vmatpush.msra.mxu0 0.0
        %1552 = vmatpush.msra.mxu0 0.0
        %1553 = vmatpush.msra.mxu0 0.0
        %1554 = vmatpush.msra.mxu0 0.0
        %1555 = vmatpush.msra.mxu0 0.0
        %1556 = vmatpush.msra.mxu0 0.0
        %1557 = vmatpush.msra.mxu0 0.0
        %1558 = vmatpush.msra.mxu0 %v1535
        %1559 = vmatmul.f32.gmra.mxu0 %v1532
        %v1560 = vpop.f32.mrf.mxu0
        %v1561 = vadd.f32 0.0, %v1560
        %1562 = vdwg.mxu0
        %1563 = vmatpush.msra.mxu0 0.0
        %1564 = vmatpush.msra.mxu0 0.0
        %1565 = vmatpush.msra.mxu0 0.0
        %1566 = vmatpush.msra.mxu0 0.0
        %1567 = vmatpush.msra.mxu0 0.0
        %1568 = vmatpush.msra.mxu0 0.0
        %1569 = vmatpush.msra.mxu0 0.0
        %1570 = vmatpush.msra.mxu0 0.0
        %1571 = vmatpush.msra.mxu0 0.0
        %1572 = vmatpush.msra.mxu0 0.0
        %1573 = vmatpush.msra.mxu0 0.0
        %1574 = vmatpush.msra.mxu0 0.0
        %1575 = vmatpush.msra.mxu0 0.0
        %1576 = vmatpush.msra.mxu0 0.0
        %1577 = vmatpush.msra.mxu0 0.0
        %1578 = vmatpush.msra.mxu0 %v1538
        %1579 = vmatmul.f32.gmra.mxu0 %v1532
        %v1580 = vpop.f32.mrf.mxu0
        %v1581 = vadd.f32 0.0, %v1580
        %1582 = vdwg.mxu0
        %1583 = vmatpush.msra.mxu0 0.0
        %1584 = vmatpush.msra.mxu0 0.0
        %1585 = vmatpush.msra.mxu0 0.0
        %1586 = vmatpush.msra.mxu0 0.0
        %1587 = vmatpush.msra.mxu0 0.0
        %1588 = vmatpush.msra.mxu0 0.0
        %1589 = vmatpush.msra.mxu0 0.0
        %1590 = vmatpush.msra.mxu0 0.0
        %1591 = vmatpush.msra.mxu0 0.0
        %1592 = vmatpush.msra.mxu0 0.0
        %1593 = vmatpush.msra.mxu0 0.0
        %1594 = vmatpush.msra.mxu0 0.0
        %1595 = vmatpush.msra.mxu0 0.0
        %1596 = vmatpush.msra.mxu0 0.0
        %1597 = vmatpush.msra.mxu0 0.0
        %1598 = vmatpush.msra.mxu0 %v1541
        %1599 = vmatmul.f32.gmra.mxu0 %v1532
        %v1600 = vpop.f32.mrf.mxu0
        %v1601 = vadd.f32 0.0, %v1600
        %1602 = vdwg.mxu0
        %v1604 = vsel %vm757, %v415, 0
        %v1607 = vsel %vm429, %v735, 0
        %v1610 = vsel %vm429, %v736, 0
        %v1613 = vsel %vm429, %v737, 0
        %1615 = vmatpush.msra.mxu0 0.0
        %1616 = vmatpush.msra.mxu0 0.0
        %1617 = vmatpush.msra.mxu0 0.0
        %1618 = vmatpush.msra.mxu0 0.0
        %1619 = vmatpush.msra.mxu0 0.0
        %1620 = vmatpush.msra.mxu0 0.0
        %1621 = vmatpush.msra.mxu0 0.0
        %1622 = vmatpush.msra.mxu0 0.0
        %1623 = vmatpush.msra.mxu0 0.0
        %1624 = vmatpush.msra.mxu0 0.0
        %1625 = vmatpush.msra.mxu0 0.0
        %1626 = vmatpush.msra.mxu0 0.0
        %1627 = vmatpush.msra.mxu0 0.0
        %1628 = vmatpush.msra.mxu0 0.0
        %1629 = vmatpush.msra.mxu0 0.0
        %1630 = vmatpush.msra.mxu0 %v1607
        %1631 = vmatmul.f32.gmra.mxu0 %v1604
        %v1632 = vpop.f32.mrf.mxu0
        %v1633 = vadd.f32 %v1561, %v1632
        %1634 = vdwg.mxu0
        %1635 = vmatpush.msra.mxu0 0.0
        %1636 = vmatpush.msra.mxu0 0.0
        %1637 = vmatpush.msra.mxu0 0.0
        %1638 = vmatpush.msra.mxu0 0.0
        %1639 = vmatpush.msra.mxu0 0.0
        %1640 = vmatpush.msra.mxu0 0.0
        %1641 = vmatpush.msra.mxu0 0.0
        %1642 = vmatpush.msra.mxu0 0.0
        %1643 = vmatpush.msra.mxu0 0.0
        %1644 = vmatpush.msra.mxu0 0.0
        %1645 = vmatpush.msra.mxu0 0.0
        %1646 = vmatpush.msra.mxu0 0.0
        %1647 = vmatpush.msra.mxu0 0.0
        %1648 = vmatpush.msra.mxu0 0.0
        %1649 = vmatpush.msra.mxu0 0.0
        %1650 = vmatpush.msra.mxu0 %v1610
        %1651 = vmatmul.f32.gmra.mxu0 %v1604
        %v1652 = vpop.f32.mrf.mxu0
        %v1653 = vadd.f32 %v1581, %v1652
        %1654 = vdwg.mxu0
        %1655 = vmatpush.msra.mxu0 0.0
        %1656 = vmatpush.msra.mxu0 0.0
        %1657 = vmatpush.msra.mxu0 0.0
        %1658 = vmatpush.msra.mxu0 0.0
        %1659 = vmatpush.msra.mxu0 0.0
        %1660 = vmatpush.msra.mxu0 0.0
        %1661 = vmatpush.msra.mxu0 0.0
        %1662 = vmatpush.msra.mxu0 0.0
        %1663 = vmatpush.msra.mxu0 0.0
        %1664 = vmatpush.msra.mxu0 0.0
        %1665 = vmatpush.msra.mxu0 0.0
        %1666 = vmatpush.msra.mxu0 0.0
        %1667 = vmatpush.msra.mxu0 0.0
        %1668 = vmatpush.msra.mxu0 0.0
        %1669 = vmatpush.msra.mxu0 0.0
        %1670 = vmatpush.msra.mxu0 %v1613
        %1671 = vmatmul.f32.gmra.mxu0 %v1604
        %v1672 = vpop.f32.mrf.mxu0
        %v1673 = vadd.f32 %v1601, %v1672
        %1674 = vdwg.mxu0
        %1676 = vset.pattern.permute.xlu0 0
        %1677 = vperm.xlu0 %1676, %v417
        %v1678 = vpop.permute.xlu0 %1677
        %v1680 = vadd.f32 %v1633, %v1678
        %v1681 = vadd.f32 %v1653, %v1678
        %v1682 = vadd.f32 %v1673, %v1678
        %v1685 = vrot.slane %v1681, 4
        %vm1686 = vcmask 1043456
        %v1687 = vsel %vm1686, %v1680, %v1685
        %1689 = vst [vmem:[%s396] sm:$0xff] %v1687
        %1690 = vst [vmem:[%s396 + $0x8] sm:$0xf] %v1682
        %s1691 = sand.u32 %s259, 1
        %s1692 = scalar_lea.sflag [#allocation6], %s1691
        %s1693 = sand.u32 %s259, 1
        %s1694 = smul.addr %s1693, 12
        %s1695 = scalar_lea.vmem [#allocation7], %s1694
        // Predicated region
        $region65: #{tpu_custom_call.1} parent=59 // pred_check
          %p1696 = pneg %p269
        $region66: #{tpu_custom_call.1} parent=59 // pred_check_branch
          %1698 = sbr.rel (%p1696) target = $region68
        $region67: #{tpu_custom_call.1} parent=59 // pred_region
          %1700 = vsyncadd %s1692, 0
          %s1701 = smul.addr %s31, 3
          %s1702 = smul.addr %s1701, 4
          %s1703 = scalar_lea.hbm %s10, %s1702
          %s1705 = sshll.u32 %s1695, 4
          %s1706 = int_to_ptr.vmem [resolvable:$true] %s1705
          %s1707 = sshll.u32 %s1703, 4
          %s1708 = int_to_ptr.hbm [resolvable:$true] %s1707
          %1710 = dma.vmem_to_hbm [thread:$0]  %s1706, 192, %s1708, %s1692
        $region68: #{tpu_custom_call.1} parent=59 // pred_fallthru
          _
      $region60: #{tpu_custom_call.1} parent=5 // pred_fallthru
        _
      %p1711 = scmp.le.s32.totalorder 2, %s26
      // Predicated region
      $region69: #{tpu_custom_call.1} parent=5 // pred_check
        %p1712 = pneg %p1711
      $region70: #{tpu_custom_call.1} parent=5 // pred_check_branch
        %1714 = sbr.rel (%p1712) target = $region72
      $region71: #{tpu_custom_call.1} parent=5 // pred_region
        %s1715 = ssub.s32 %s26, 2
        // Predicated region
        $region73: #{tpu_custom_call.1} parent=71 // pred_check
          %p1716 = pneg %p275
        $region74: #{tpu_custom_call.1} parent=71 // pred_check_branch
          %1718 = sbr.rel (%p1716) target = $region76
        $region75: #{tpu_custom_call.1} parent=71 // pred_region
          %s1719 = sand.u32 %s260, 1
          %s1720 = scalar_lea.sflag [#allocation6], %s1719
          %s1721 = sand.u32 %s260, 1
          %s1722 = smul.addr %s1721, 12
          %s1723 = scalar_lea.vmem [#allocation7], %s1722
          %1725 = dma.done %s1720, 192
        $region76: #{tpu_custom_call.1} parent=71 // pred_fallthru
          _
      $region72: #{tpu_custom_call.1} parent=5 // pred_fallthru
        _
    $region6: #{tpu_custom_call.1} parent=1 // loop_footer
      %s30 = sadd.s32 1, %s26
    $region7: #{tpu_custom_call.1} parent=1 // loop_footer_branch
      %25 = sbr.rel target = $region3
    $region8: #{tpu_custom_call.1} parent=1 // loop_exit
      _
    %1726 = vsyncpa [#allocation5], 1
    %s1727 = scalar_lea.sflag [#allocation5], 1
    %1728 = vsyncpa %s1727, 1
    %1729 = vsyncpa [#allocation6], 1
    %s1730 = scalar_lea.sflag [#allocation6], 1
    %1731 = vsyncpa %s1730, 1

</llo_original>
